<compile_context>
chip_gen: v7x
topology: tpu7x:2x2x1
jax: 0.10.0
libtpu: 0.0.40
codegen_flags: <defaults>
</compile_context>

<pallas_src>
import jax
import jax.numpy as jnp
from jax import lax
from jax.experimental import pallas as pl
from jax.experimental.pallas import tpu as pltpu


def _round_up(x, m):
    return (x + m - 1) // m * m


def _make_kernel(B, K, C1, C2, PH1, PWP, OH2, PH2, PW2, P1ROWS, op_dtype):
    QROWS = PH1 * PWP            # pool1 rows per image at pitch PWP
    QB = B * QROWS               # pool1 rows per grid step
    MW2 = OH2 * PWP              # "wide" conv2 rows per image (cols padded to PWP)

    def kernel(x_ref, w1_ref, b1_ref, w2_ref, b2_ref, o_ref, p1s, ps2, c2s):
        # ------------- conv1: ONE batched MXU matmul for the whole tile -------------
        c1 = jnp.dot(x_ref[...], w1_ref[...],
                     preferred_element_type=jnp.float32) + b1_ref[...]   # (4*QB, C1) f32

        # ------------- maxpool1 2x2: max over the 4 aligned quadrant blocks ---------
        p1 = jnp.maximum(jnp.maximum(c1[0 * QB:1 * QB], c1[1 * QB:2 * QB]),
                         jnp.maximum(c1[2 * QB:3 * QB], c1[3 * QB:4 * QB]))  # (QB, C1)
        p1s[0:QB, :] = p1
        # Overrun tail rows are only ever read by discarded "wide" conv2 columns;
        # zero them so those rows stay finite / deterministic.
        if P1ROWS > QB:
            p1s[QB:P1ROWS, :] = jnp.zeros((P1ROWS - QB, C1), jnp.float32)

        # ------------- conv2 im2col: 25 contiguous slice copies per image -----------
        # TODO(synk): on v7x (MRB accumulation) the 25-accumulated-matmul variant
        # reading taps straight from p1s could drop ps2 entirely.
        for b in range(B):
            src = b * QROWS
            dst = b * MW2
            for ky in range(K):
                for kx in range(K):
                    t = ky * K + kx
                    off = src + ky * PWP + kx
                    ps2[dst:dst + MW2, t * C1:(t + 1) * C1] = (
                        p1s[off:off + MW2, :].astype(op_dtype))

        # ------------- conv2: ONE batched MXU matmul --------------------------------
        c2s[...] = jnp.dot(ps2[...], w2_ref[...],
                           preferred_element_type=jnp.float32) + b2_ref[...]  # (B*MW2, C2)

        # ------------- maxpool2 2x2 + output write (vectorized over the tile) -------
        def rows(base):  # one conv2 position per image across the tile -> (B, C2)
            if B == 1:
                return c2s[base:base + 1, :]
            return c2s[pl.ds(base, B, stride=MW2), :]

        for i2 in range(PH2):
            for j2 in range(PW2):
                base = 2 * i2 * PWP + 2 * j2
                r = jnp.maximum(jnp.maximum(rows(base), rows(base + 1)),
                                jnp.maximum(rows(base + PWP), rows(base + PWP + 1)))
                o_ref[:, i2 * PW2 + j2, :] = r

    return kernel


def spaconv_forward(spa_map_nchw, w1_oihw, b1, w2_oihw, b2, *, op_dtype=jnp.bfloat16):
    """Pallas implementation of SpaConv.forward. Input is NCHW like PyTorch."""
    N, Cin, H, W = spa_map_nchw.shape
    C1, _, K, _ = w1_oihw.shape
    C2 = w2_oihw.shape[0]

    OH1, OW1 = H - K + 1, W - K + 1          # conv1 output spatial
    PH1, PW1 = OH1 // 2, OW1 // 2            # pool1 output spatial
    OH2, OW2 = PH1 - K + 1, PW1 - K + 1      # conv2 output spatial
    PH2, PW2 = OH2 // 2, OW2 // 2            # pool2 output spatial
    assert OH1 >= 2 and OW1 >= 2 and OH2 >= 2 and OW2 >= 2, "spatial size too small"

    PWP = _round_up(PW1, 8)                  # pool1 / wide-conv2 column pitch
    QROWS = PH1 * PWP                        # pool1 rows per image
    MW2 = OH2 * PWP                          # wide conv2 rows per image
    KKCin = K * K * Cin
    KKCin_p = _round_up(KKCin, 64)
    KKC1 = K * K * C1

    # batch tile: largest power-of-two divisor of N that keeps >= 2 grid steps
    B = 1
    for cand in (8, 4, 2):
        if N % cand == 0 and N // cand >= 2:
            B = cand
            break
    G = N // B

    P1ROWS = _round_up(B * QROWS + K - 1, 8)
    R1 = 4 * B * QROWS                        # conv1 patch rows per grid step

    # ---- wrapper-side conv1 im2col (pure XLA layout plumbing) -------------------
    x = jnp.transpose(spa_map_nchw, (0, 2, 3, 1)).astype(jnp.float32)    # NHWC
    taps = [x[:, ky:ky + OH1, kx:kx + OW1, :] for ky in range(K) for kx in range(K)]
    pat = jnp.stack(taps, axis=3).reshape(N, OH1, OW1, KKCin)            # (tap, cin) minor
    pat = pat[:, :2 * PH1, :2 * PW1, :]                                  # floor-pool grid
    pat = pat.reshape(N, PH1, 2, PW1, 2, KKCin)
    pat = jnp.transpose(pat, (2, 4, 0, 1, 3, 5))                         # (di, dj, N, i, j, kk)
    pat = jnp.pad(pat, ((0, 0), (0, 0), (0, 0), (0, 0),
                        (0, PWP - PW1), (0, KKCin_p - KKCin)))
    pat = pat.reshape(2, 2, G, B, QROWS, KKCin_p)
    pat = jnp.transpose(pat, (2, 0, 1, 3, 4, 5))                         # (G, di, dj, B, rows, kk)
    x_pat = pat.reshape(G * R1, KKCin_p).astype(op_dtype)

    w1_flat = jnp.transpose(w1_oihw, (2, 3, 1, 0)).reshape(KKCin, C1)
    w1_flat = jnp.pad(w1_flat, ((0, KKCin_p - KKCin), (0, 0))).astype(op_dtype)
    w2_flat = jnp.transpose(w2_oihw, (2, 3, 1, 0)).reshape(KKC1, C2).astype(op_dtype)
    b1_2d = b1.reshape(1, C1).astype(jnp.float32)
    b2_2d = b2.reshape(1, C2).astype(jnp.float32)

    kernel = _make_kernel(B, K, C1, C2, PH1, PWP, OH2, PH2, PW2, P1ROWS, op_dtype)

    out = pl.pallas_call(
        kernel,
        out_shape=jax.ShapeDtypeStruct((N, PH2 * PW2, C2), jnp.float32),
        grid_spec=pltpu.PrefetchScalarGridSpec(
            num_scalar_prefetch=0,
            grid=(G,),
            in_specs=[
                pl.BlockSpec((R1, KKCin_p), lambda g: (g, 0)),       # conv1 patches
                pl.BlockSpec((KKCin_p, C1), lambda g: (0, 0)),       # w1
                pl.BlockSpec((1, C1), lambda g: (0, 0)),             # b1
                pl.BlockSpec((KKC1, C2), lambda g: (0, 0)),          # w2
                pl.BlockSpec((1, C2), lambda g: (0, 0)),             # b2
            ],
            out_specs=pl.BlockSpec((B, PH2 * PW2, C2), lambda g: (g, 0, 0)),
            scratch_shapes=[
                pltpu.VMEM((P1ROWS, C1), jnp.float32),               # pool1 map (pitch PWP)
                pltpu.VMEM((B * MW2, KKC1), op_dtype),               # conv2 im2col patches
                pltpu.VMEM((B * MW2, C2), jnp.float32),              # conv2 output (wide)
            ],
        ),
        compiler_params=pltpu.CompilerParams(
            dimension_semantics=("parallel",)),
    )(x_pat, w1_flat, b1_2d, w2_flat, b2_2d)

    # window-position-major -> PyTorch channel-major flatten (pool2.view(N, -1))
    return jnp.transpose(out, (0, 2, 1)).reshape(N, -1)


def spaconv_reference(spa_map, w1, b1, w2, b2):
    """Pure-JAX f32 reference replicating the PyTorch forward (NCHW / OIHW)."""
    dn = ("NCHW", "OIHW", "NCHW")
    c1 = lax.conv_general_dilated(spa_map, w1, (1, 1), "VALID",
                                  dimension_numbers=dn) + b1[None, :, None, None]
    p1 = lax.reduce_window(c1, -jnp.inf, lax.max, (1, 1, 2, 2), (1, 1, 2, 2), "VALID")
    c2 = lax.conv_general_dilated(p1, w2, (1, 1), "VALID",
                                  dimension_numbers=dn) + b2[None, :, None, None]
    p2 = lax.reduce_window(c2, -jnp.inf, lax.max, (1, 1, 2, 2), (1, 1, 2, 2), "VALID")
    return p2.reshape(spa_map.shape[0], -1)


if __name__ == "__main__":
    key = jax.random.PRNGKey(0)
    k_x, k_w1, k_b1, k_w2, k_b2 = jax.random.split(key, 5)

    # Module implies Cin=2; batch=2 and 16x16 spatial
    # (16 -> conv1 12 -> pool 6 -> conv2 2 -> pool 1 -> flatten 32).
    N, Cin, H, W = 2, 2, 16, 16
    C1, C2, K = 64, 32, 5

    spa_map = jax.random.normal(k_x, (N, Cin, H, W), jnp.float32)
    w1 = jax.random.normal(k_w1, (C1, Cin, K, K), jnp.float32) * 0.1
    b1 = jax.random.normal(k_b1, (C1,), jnp.float32) * 0.1
    w2 = jax.random.normal(k_w2, (C2, C1, K, K), jnp.float32) * 0.05
    b2 = jax.random.normal(k_b2, (C2,), jnp.float32) * 0.05

    out = jax.block_until_ready(jax.jit(spaconv_forward)(spa_map, w1, b1, w2, b2))

    ref = spaconv_reference(spa_map, w1, b1, w2, b2)
    assert out.shape == ref.shape, (out.shape, ref.shape)
    # bf16 MXU operands (f32 accumulation): tolerance sized for the K=1600 conv2 reduction
    if not bool(jnp.allclose(out, ref, atol=3e-2, rtol=3e-2)):
        raise AssertionError(
            f"mismatch, max abs err = {float(jnp.max(jnp.abs(out - ref)))}")

    print("KERNEL_OK")
</pallas_src>

<mosaic_0001>
module attributes {stable_mosaic.version = 11 : i64} {
  func.func @kernel(%arg0: i32, %arg1: memref<192x64xbf16, #tpu.memory_space<vmem>>, %arg2: memref<64x64xbf16, #tpu.memory_space<vmem>>, %arg3: memref<1x64xf32, #tpu.memory_space<vmem>>, %arg4: memref<1600x32xbf16, #tpu.memory_space<vmem>>, %arg5: memref<1x32xf32, #tpu.memory_space<vmem>>, %arg6: memref<1x1x32xf32, #tpu.memory_space<vmem>>, %arg7: memref<56x64xf32, #tpu.memory_space<vmem>>, %arg8: memref<16x1600xbf16, #tpu.memory_space<vmem>>, %arg9: memref<16x32xf32, #tpu.memory_space<vmem>>) attributes {dimension_semantics = [#tpu.dimension_semantics<parallel>], iteration_bounds = array<i64: 2>, scalar_prefetch = 0 : i64, scratch_operands = 3 : i64, tpu.core_type = #tpu.core_type<tc>, window_params = [{transform_indices = @transform_0, window_bounds = array<i64: 192, 64>}, {pipeline_mode = #tpu.pipeline_mode<synchronous>, transform_indices = @transform_1, window_bounds = array<i64: 64, 64>}, {pipeline_mode = #tpu.pipeline_mode<synchronous>, transform_indices = @transform_2, window_bounds = array<i64: 1, 64>}, {pipeline_mode = #tpu.pipeline_mode<synchronous>, transform_indices = @transform_3, window_bounds = array<i64: 1600, 32>}, {pipeline_mode = #tpu.pipeline_mode<synchronous>, transform_indices = @transform_4, window_bounds = array<i64: 1, 32>}, {transform_indices = @transform_5, window_bounds = array<i64: 1, 1, 32>}]} {
    %c0 = arith.constant 0 : index
    %c0_0 = arith.constant 0 : index
    %0 = vector.load %arg1[%c0, %c0_0] : memref<192x64xbf16, #tpu.memory_space<vmem>>, vector<192x64xbf16>
    %c0_1 = arith.constant 0 : index
    %c0_2 = arith.constant 0 : index
    %1 = vector.load %arg2[%c0_1, %c0_2] : memref<64x64xbf16, #tpu.memory_space<vmem>>, vector<64x64xbf16>
    %cst = arith.constant dense<0.000000e+00> : vector<192x64xf32>
    %2 = tpu.matmul %0, %1, %cst {dimension_numbers = #tpu.dot_dimension_numbers<[1], [0], [0], [1], [0, 0, 1, 1], [], []>} : vector<192x64xbf16>, vector<64x64xbf16>, vector<192x64xf32> -> vector<192x64xf32>
    %c0_3 = arith.constant 0 : index
    %c0_4 = arith.constant 0 : index
    %3 = vector.load %arg3[%c0_3, %c0_4] : memref<1x64xf32, #tpu.memory_space<vmem>>, vector<1x64xf32>
    %4 = vector.broadcast %3 : vector<1x64xf32> to vector<192x64xf32>
    %5 = arith.addf %2, %4 : vector<192x64xf32>
    %6 = vector.extract_strided_slice %5 {offsets = [0, 0], sizes = [48, 64], strides = [1, 1]} : vector<192x64xf32> to vector<48x64xf32>
    %7 = vector.extract_strided_slice %5 {offsets = [48, 0], sizes = [48, 64], strides = [1, 1]} : vector<192x64xf32> to vector<48x64xf32>
    %8 = arith.maximumf %6, %7 : vector<48x64xf32>
    %9 = vector.extract_strided_slice %5 {offsets = [96, 0], sizes = [48, 64], strides = [1, 1]} : vector<192x64xf32> to vector<48x64xf32>
    %10 = vector.extract_strided_slice %5 {offsets = [144, 0], sizes = [48, 64], strides = [1, 1]} : vector<192x64xf32> to vector<48x64xf32>
    %11 = arith.maximumf %9, %10 : vector<48x64xf32>
    %12 = arith.maximumf %8, %11 : vector<48x64xf32>
    %c0_5 = arith.constant 0 : index
    %c0_6 = arith.constant 0 : index
    %13 = vector.load %arg7[%c0_5, %c0_6] : memref<56x64xf32, #tpu.memory_space<vmem>>, vector<48x64xf32>
    tpu.vector_store %arg7[%c0_5, %c0_6], %12 {strides = array<i32>} : memref<56x64xf32, #tpu.memory_space<vmem>>, vector<48x64xf32>,
    %cst_7 = arith.constant 0.000000e+00 : f32
    %14 = vector.broadcast %cst_7 : f32 to vector<8x64xf32>
    %c48 = arith.constant 48 : index
    %c0_8 = arith.constant 0 : index
    %15 = vector.load %arg7[%c48, %c0_8] : memref<56x64xf32, #tpu.memory_space<vmem>>, vector<8x64xf32>
    tpu.vector_store %arg7[%c48, %c0_8], %14 {strides = array<i32>} : memref<56x64xf32, #tpu.memory_space<vmem>>, vector<8x64xf32>,
    %c0_9 = arith.constant 0 : index
    %c0_10 = arith.constant 0 : index
    %16 = vector.load %arg7[%c0_9, %c0_10] : memref<56x64xf32, #tpu.memory_space<vmem>>, vector<16x64xf32>
    %17 = arith.truncf %16 : vector<16x64xf32> to vector<16x64xbf16>
    %c0_11 = arith.constant 0 : index
    %c0_12 = arith.constant 0 : index
    %18 = vector.load %arg8[%c0_11, %c0_12] : memref<16x1600xbf16, #tpu.memory_space<vmem>>, vector<16x64xbf16>
    tpu.vector_store %arg8[%c0_11, %c0_12], %17 {strides = array<i32>} : memref<16x1600xbf16, #tpu.memory_space<vmem>>, vector<16x64xbf16>,
    %c1 = arith.constant 1 : index
    %c0_13 = arith.constant 0 : index
    %19 = vector.load %arg7[%c1, %c0_13] : memref<56x64xf32, #tpu.memory_space<vmem>>, vector<16x64xf32>
    %20 = arith.truncf %19 : vector<16x64xf32> to vector<16x64xbf16>
    %c0_14 = arith.constant 0 : index
    %c64 = arith.constant 64 : index
    %21 = vector.load %arg8[%c0_14, %c64] : memref<16x1600xbf16, #tpu.memory_space<vmem>>, vector<16x64xbf16>
    tpu.vector_store %arg8[%c0_14, %c64], %20 {strides = array<i32>} : memref<16x1600xbf16, #tpu.memory_space<vmem>>, vector<16x64xbf16>,
    %c2 = arith.constant 2 : index
    %c0_15 = arith.constant 0 : index
    %22 = vector.load %arg7[%c2, %c0_15] : memref<56x64xf32, #tpu.memory_space<vmem>>, vector<16x64xf32>
    %23 = arith.truncf %22 : vector<16x64xf32> to vector<16x64xbf16>
    %c0_16 = arith.constant 0 : index
    %c128 = arith.constant 128 : index
    %24 = vector.load %arg8[%c0_16, %c128] : memref<16x1600xbf16, #tpu.memory_space<vmem>>, vector<16x64xbf16>
    tpu.vector_store %arg8[%c0_16, %c128], %23 {strides = array<i32>} : memref<16x1600xbf16, #tpu.memory_space<vmem>>, vector<16x64xbf16>,
    %c3 = arith.constant 3 : index
    %c0_17 = arith.constant 0 : index
    %25 = vector.load %arg7[%c3, %c0_17] : memref<56x64xf32, #tpu.memory_space<vmem>>, vector<16x64xf32>
    %26 = arith.truncf %25 : vector<16x64xf32> to vector<16x64xbf16>
    %c0_18 = arith.constant 0 : index
    %c192 = arith.constant 192 : index
    %27 = vector.load %arg8[%c0_18, %c192] : memref<16x1600xbf16, #tpu.memory_space<vmem>>, vector<16x64xbf16>
    tpu.vector_store %arg8[%c0_18, %c192], %26 {strides = array<i32>} : memref<16x1600xbf16, #tpu.memory_space<vmem>>, vector<16x64xbf16>,
    %c4 = arith.constant 4 : index
    %c0_19 = arith.constant 0 : index
    %28 = vector.load %arg7[%c4, %c0_19] : memref<56x64xf32, #tpu.memory_space<vmem>>, vector<16x64xf32>
    %29 = arith.truncf %28 : vector<16x64xf32> to vector<16x64xbf16>
    %c0_20 = arith.constant 0 : index
    %c256 = arith.constant 256 : index
    %30 = vector.load %arg8[%c0_20, %c256] : memref<16x1600xbf16, #tpu.memory_space<vmem>>, vector<16x64xbf16>
    tpu.vector_store %arg8[%c0_20, %c256], %29 {strides = array<i32>} : memref<16x1600xbf16, #tpu.memory_space<vmem>>, vector<16x64xbf16>,
    %c8 = arith.constant 8 : index
    %c0_21 = arith.constant 0 : index
    %31 = vector.load %arg7[%c8, %c0_21] : memref<56x64xf32, #tpu.memory_space<vmem>>, vector<16x64xf32>
    %32 = arith.truncf %31 : vector<16x64xf32> to vector<16x64xbf16>
    %c0_22 = arith.constant 0 : index
    %c320 = arith.constant 320 : index
    %33 = vector.load %arg8[%c0_22, %c320] : memref<16x1600xbf16, #tpu.memory_space<vmem>>, vector<16x64xbf16>
    tpu.vector_store %arg8[%c0_22, %c320], %32 {strides = array<i32>} : memref<16x1600xbf16, #tpu.memory_space<vmem>>, vector<16x64xbf16>,
    %c9 = arith.constant 9 : index
    %c0_23 = arith.constant 0 : index
    %34 = vector.load %arg7[%c9, %c0_23] : memref<56x64xf32, #tpu.memory_space<vmem>>, vector<16x64xf32>
    %35 = arith.truncf %34 : vector<16x64xf32> to vector<16x64xbf16>
    %c0_24 = arith.constant 0 : index
    %c384 = arith.constant 384 : index
    %36 = vector.load %arg8[%c0_24, %c384] : memref<16x1600xbf16, #tpu.memory_space<vmem>>, vector<16x64xbf16>
    tpu.vector_store %arg8[%c0_24, %c384], %35 {strides = array<i32>} : memref<16x1600xbf16, #tpu.memory_space<vmem>>, vector<16x64xbf16>,
    %c10 = arith.constant 10 : index
    %c0_25 = arith.constant 0 : index
    %37 = vector.load %arg7[%c10, %c0_25] : memref<56x64xf32, #tpu.memory_space<vmem>>, vector<16x64xf32>
    %38 = arith.truncf %37 : vector<16x64xf32> to vector<16x64xbf16>
    %c0_26 = arith.constant 0 : index
    %c448 = arith.constant 448 : index
    %39 = vector.load %arg8[%c0_26, %c448] : memref<16x1600xbf16, #tpu.memory_space<vmem>>, vector<16x64xbf16>
    tpu.vector_store %arg8[%c0_26, %c448], %38 {strides = array<i32>} : memref<16x1600xbf16, #tpu.memory_space<vmem>>, vector<16x64xbf16>,
    %c11 = arith.constant 11 : index
    %c0_27 = arith.constant 0 : index
    %40 = vector.load %arg7[%c11, %c0_27] : memref<56x64xf32, #tpu.memory_space<vmem>>, vector<16x64xf32>
    %41 = arith.truncf %40 : vector<16x64xf32> to vector<16x64xbf16>
    %c0_28 = arith.constant 0 : index
    %c512 = arith.constant 512 : index
    %42 = vector.load %arg8[%c0_28, %c512] : memref<16x1600xbf16, #tpu.memory_space<vmem>>, vector<16x64xbf16>
    tpu.vector_store %arg8[%c0_28, %c512], %41 {strides = array<i32>} : memref<16x1600xbf16, #tpu.memory_space<vmem>>, vector<16x64xbf16>,
    %c12 = arith.constant 12 : index
    %c0_29 = arith.constant 0 : index
    %43 = vector.load %arg7[%c12, %c0_29] : memref<56x64xf32, #tpu.memory_space<vmem>>, vector<16x64xf32>
    %44 = arith.truncf %43 : vector<16x64xf32> to vector<16x64xbf16>
    %c0_30 = arith.constant 0 : index
    %c576 = arith.constant 576 : index
    %45 = vector.load %arg8[%c0_30, %c576] : memref<16x1600xbf16, #tpu.memory_space<vmem>>, vector<16x64xbf16>
    tpu.vector_store %arg8[%c0_30, %c576], %44 {strides = array<i32>} : memref<16x1600xbf16, #tpu.memory_space<vmem>>, vector<16x64xbf16>,
    %c16 = arith.constant 16 : index
    %c0_31 = arith.constant 0 : index
    %46 = vector.load %arg7[%c16, %c0_31] : memref<56x64xf32, #tpu.memory_space<vmem>>, vector<16x64xf32>
    %47 = arith.truncf %46 : vector<16x64xf32> to vector<16x64xbf16>
    %c0_32 = arith.constant 0 : index
    %c640 = arith.constant 640 : index
    %48 = vector.load %arg8[%c0_32, %c640] : memref<16x1600xbf16, #tpu.memory_space<vmem>>, vector<16x64xbf16>
    tpu.vector_store %arg8[%c0_32, %c640], %47 {strides = array<i32>} : memref<16x1600xbf16, #tpu.memory_space<vmem>>, vector<16x64xbf16>,
    %c17 = arith.constant 17 : index
    %c0_33 = arith.constant 0 : index
    %49 = vector.load %arg7[%c17, %c0_33] : memref<56x64xf32, #tpu.memory_space<vmem>>, vector<16x64xf32>
    %50 = arith.truncf %49 : vector<16x64xf32> to vector<16x64xbf16>
    %c0_34 = arith.constant 0 : index
    %c704 = arith.constant 704 : index
    %51 = vector.load %arg8[%c0_34, %c704] : memref<16x1600xbf16, #tpu.memory_space<vmem>>, vector<16x64xbf16>
    tpu.vector_store %arg8[%c0_34, %c704], %50 {strides = array<i32>} : memref<16x1600xbf16, #tpu.memory_space<vmem>>, vector<16x64xbf16>,
    %c18 = arith.constant 18 : index
    %c0_35 = arith.constant 0 : index
    %52 = vector.load %arg7[%c18, %c0_35] : memref<56x64xf32, #tpu.memory_space<vmem>>, vector<16x64xf32>
    %53 = arith.truncf %52 : vector<16x64xf32> to vector<16x64xbf16>
    %c0_36 = arith.constant 0 : index
    %c768 = arith.constant 768 : index
    %54 = vector.load %arg8[%c0_36, %c768] : memref<16x1600xbf16, #tpu.memory_space<vmem>>, vector<16x64xbf16>
    tpu.vector_store %arg8[%c0_36, %c768], %53 {strides = array<i32>} : memref<16x1600xbf16, #tpu.memory_space<vmem>>, vector<16x64xbf16>,
    %c19 = arith.constant 19 : index
    %c0_37 = arith.constant 0 : index
    %55 = vector.load %arg7[%c19, %c0_37] : memref<56x64xf32, #tpu.memory_space<vmem>>, vector<16x64xf32>
    %56 = arith.truncf %55 : vector<16x64xf32> to vector<16x64xbf16>
    %c0_38 = arith.constant 0 : index
    %c832 = arith.constant 832 : index
    %57 = vector.load %arg8[%c0_38, %c832] : memref<16x1600xbf16, #tpu.memory_space<vmem>>, vector<16x64xbf16>
    tpu.vector_store %arg8[%c0_38, %c832], %56 {strides = array<i32>} : memref<16x1600xbf16, #tpu.memory_space<vmem>>, vector<16x64xbf16>,
    %c20 = arith.constant 20 : index
    %c0_39 = arith.constant 0 : index
    %58 = vector.load %arg7[%c20, %c0_39] : memref<56x64xf32, #tpu.memory_space<vmem>>, vector<16x64xf32>
    %59 = arith.truncf %58 : vector<16x64xf32> to vector<16x64xbf16>
    %c0_40 = arith.constant 0 : index
    %c896 = arith.constant 896 : index
    %60 = vector.load %arg8[%c0_40, %c896] : memref<16x1600xbf16, #tpu.memory_space<vmem>>, vector<16x64xbf16>
    tpu.vector_store %arg8[%c0_40, %c896], %59 {strides = array<i32>} : memref<16x1600xbf16, #tpu.memory_space<vmem>>, vector<16x64xbf16>,
    %c24 = arith.constant 24 : index
    %c0_41 = arith.constant 0 : index
    %61 = vector.load %arg7[%c24, %c0_41] : memref<56x64xf32, #tpu.memory_space<vmem>>, vector<16x64xf32>
    %62 = arith.truncf %61 : vector<16x64xf32> to vector<16x64xbf16>
    %c0_42 = arith.constant 0 : index
    %c960 = arith.constant 960 : index
    %63 = vector.load %arg8[%c0_42, %c960] : memref<16x1600xbf16, #tpu.memory_space<vmem>>, vector<16x64xbf16>
    tpu.vector_store %arg8[%c0_42, %c960], %62 {strides = array<i32>} : memref<16x1600xbf16, #tpu.memory_space<vmem>>, vector<16x64xbf16>,
    %c25 = arith.constant 25 : index
    %c0_43 = arith.constant 0 : index
    %64 = vector.load %arg7[%c25, %c0_43] : memref<56x64xf32, #tpu.memory_space<vmem>>, vector<16x64xf32>
    %65 = arith.truncf %64 : vector<16x64xf32> to vector<16x64xbf16>
    %c0_44 = arith.constant 0 : index
    %c1024 = arith.constant 1024 : index
    %66 = vector.load %arg8[%c0_44, %c1024] : memref<16x1600xbf16, #tpu.memory_space<vmem>>, vector<16x64xbf16>
    tpu.vector_store %arg8[%c0_44, %c1024], %65 {strides = array<i32>} : memref<16x1600xbf16, #tpu.memory_space<vmem>>, vector<16x64xbf16>,
    %c26 = arith.constant 26 : index
    %c0_45 = arith.constant 0 : index
    %67 = vector.load %arg7[%c26, %c0_45] : memref<56x64xf32, #tpu.memory_space<vmem>>, vector<16x64xf32>
    %68 = arith.truncf %67 : vector<16x64xf32> to vector<16x64xbf16>
    %c0_46 = arith.constant 0 : index
    %c1088 = arith.constant 1088 : index
    %69 = vector.load %arg8[%c0_46, %c1088] : memref<16x1600xbf16, #tpu.memory_space<vmem>>, vector<16x64xbf16>
    tpu.vector_store %arg8[%c0_46, %c1088], %68 {strides = array<i32>} : memref<16x1600xbf16, #tpu.memory_space<vmem>>, vector<16x64xbf16>,
    %c27 = arith.constant 27 : index
    %c0_47 = arith.constant 0 : index
    %70 = vector.load %arg7[%c27, %c0_47] : memref<56x64xf32, #tpu.memory_space<vmem>>, vector<16x64xf32>
    %71 = arith.truncf %70 : vector<16x64xf32> to vector<16x64xbf16>
    %c0_48 = arith.constant 0 : index
    %c1152 = arith.constant 1152 : index
    %72 = vector.load %arg8[%c0_48, %c1152] : memref<16x1600xbf16, #tpu.memory_space<vmem>>, vector<16x64xbf16>
    tpu.vector_store %arg8[%c0_48, %c1152], %71 {strides = array<i32>} : memref<16x1600xbf16, #tpu.memory_space<vmem>>, vector<16x64xbf16>,
    %c28 = arith.constant 28 : index
    %c0_49 = arith.constant 0 : index
    %73 = vector.load %arg7[%c28, %c0_49] : memref<56x64xf32, #tpu.memory_space<vmem>>, vector<16x64xf32>
    %74 = arith.truncf %73 : vector<16x64xf32> to vector<16x64xbf16>
    %c0_50 = arith.constant 0 : index
    %c1216 = arith.constant 1216 : index
    %75 = vector.load %arg8[%c0_50, %c1216] : memref<16x1600xbf16, #tpu.memory_space<vmem>>, vector<16x64xbf16>
    tpu.vector_store %arg8[%c0_50, %c1216], %74 {strides = array<i32>} : memref<16x1600xbf16, #tpu.memory_space<vmem>>, vector<16x64xbf16>,
    %c32 = arith.constant 32 : index
    %c0_51 = arith.constant 0 : index
    %76 = vector.load %arg7[%c32, %c0_51] : memref<56x64xf32, #tpu.memory_space<vmem>>, vector<16x64xf32>
    %77 = arith.truncf %76 : vector<16x64xf32> to vector<16x64xbf16>
    %c0_52 = arith.constant 0 : index
    %c1280 = arith.constant 1280 : index
    %78 = vector.load %arg8[%c0_52, %c1280] : memref<16x1600xbf16, #tpu.memory_space<vmem>>, vector<16x64xbf16>
    tpu.vector_store %arg8[%c0_52, %c1280], %77 {strides = array<i32>} : memref<16x1600xbf16, #tpu.memory_space<vmem>>, vector<16x64xbf16>,
    %c33 = arith.constant 33 : index
    %c0_53 = arith.constant 0 : index
    %79 = vector.load %arg7[%c33, %c0_53] : memref<56x64xf32, #tpu.memory_space<vmem>>, vector<16x64xf32>
    %80 = arith.truncf %79 : vector<16x64xf32> to vector<16x64xbf16>
    %c0_54 = arith.constant 0 : index
    %c1344 = arith.constant 1344 : index
    %81 = vector.load %arg8[%c0_54, %c1344] : memref<16x1600xbf16, #tpu.memory_space<vmem>>, vector<16x64xbf16>
    tpu.vector_store %arg8[%c0_54, %c1344], %80 {strides = array<i32>} : memref<16x1600xbf16, #tpu.memory_space<vmem>>, vector<16x64xbf16>,
    %c34 = arith.constant 34 : index
    %c0_55 = arith.constant 0 : index
    %82 = vector.load %arg7[%c34, %c0_55] : memref<56x64xf32, #tpu.memory_space<vmem>>, vector<16x64xf32>
    %83 = arith.truncf %82 : vector<16x64xf32> to vector<16x64xbf16>
    %c0_56 = arith.constant 0 : index
    %c1408 = arith.constant 1408 : index
    %84 = vector.load %arg8[%c0_56, %c1408] : memref<16x1600xbf16, #tpu.memory_space<vmem>>, vector<16x64xbf16>
    tpu.vector_store %arg8[%c0_56, %c1408], %83 {strides = array<i32>} : memref<16x1600xbf16, #tpu.memory_space<vmem>>, vector<16x64xbf16>,
    %c35 = arith.constant 35 : index
    %c0_57 = arith.constant 0 : index
    %85 = vector.load %arg7[%c35, %c0_57] : memref<56x64xf32, #tpu.memory_space<vmem>>, vector<16x64xf32>
    %86 = arith.truncf %85 : vector<16x64xf32> to vector<16x64xbf16>
    %c0_58 = arith.constant 0 : index
    %c1472 = arith.constant 1472 : index
    %87 = vector.load %arg8[%c0_58, %c1472] : memref<16x1600xbf16, #tpu.memory_space<vmem>>, vector<16x64xbf16>
    tpu.vector_store %arg8[%c0_58, %c1472], %86 {strides = array<i32>} : memref<16x1600xbf16, #tpu.memory_space<vmem>>, vector<16x64xbf16>,
    %c36 = arith.constant 36 : index
    %c0_59 = arith.constant 0 : index
    %88 = vector.load %arg7[%c36, %c0_59] : memref<56x64xf32, #tpu.memory_space<vmem>>, vector<16x64xf32>
    %89 = arith.truncf %88 : vector<16x64xf32> to vector<16x64xbf16>
    %c0_60 = arith.constant 0 : index
    %c1536 = arith.constant 1536 : index
    %90 = vector.load %arg8[%c0_60, %c1536] : memref<16x1600xbf16, #tpu.memory_space<vmem>>, vector<16x64xbf16>
    tpu.vector_store %arg8[%c0_60, %c1536], %89 {strides = array<i32>} : memref<16x1600xbf16, #tpu.memory_space<vmem>>, vector<16x64xbf16>,
    %c0_61 = arith.constant 0 : index
    %c0_62 = arith.constant 0 : index
    %91 = vector.load %arg8[%c0_61, %c0_62] : memref<16x1600xbf16, #tpu.memory_space<vmem>>, vector<16x1600xbf16>
    %c0_63 = arith.constant 0 : index
    %c0_64 = arith.constant 0 : index
    %92 = vector.load %arg4[%c0_63, %c0_64] : memref<1600x32xbf16, #tpu.memory_space<vmem>>, vector<1600x32xbf16>
    %cst_65 = arith.constant dense<0.000000e+00> : vector<16x32xf32>
    %93 = tpu.matmul %91, %92, %cst_65 {dimension_numbers = #tpu.dot_dimension_numbers<[1], [0], [0], [1], [0, 0, 1, 1], [], []>} : vector<16x1600xbf16>, vector<1600x32xbf16>, vector<16x32xf32> -> vector<16x32xf32>
    %c0_66 = arith.constant 0 : index
    %c0_67 = arith.constant 0 : index
    %94 = vector.load %arg5[%c0_66, %c0_67] : memref<1x32xf32, #tpu.memory_space<vmem>>, vector<1x32xf32>
    %95 = vector.broadcast %94 : vector<1x32xf32> to vector<16x32xf32>
    %96 = arith.addf %93, %95 : vector<16x32xf32>
    %c0_68 = arith.constant 0 : index
    %c0_69 = arith.constant 0 : index
    %97 = vector.load %arg9[%c0_68, %c0_69] : memref<16x32xf32, #tpu.memory_space<vmem>>, vector<16x32xf32>
    tpu.vector_store %arg9[%c0_68, %c0_69], %96 {strides = array<i32>} : memref<16x32xf32, #tpu.memory_space<vmem>>, vector<16x32xf32>,
    %c0_70 = arith.constant 0 : index
    %c0_71 = arith.constant 0 : index
    %98 = vector.load %arg9[%c0_70, %c0_71] : memref<16x32xf32, #tpu.memory_space<vmem>>, vector<1x32xf32>
    %c1_72 = arith.constant 1 : index
    %c0_73 = arith.constant 0 : index
    %99 = vector.load %arg9[%c1_72, %c0_73] : memref<16x32xf32, #tpu.memory_space<vmem>>, vector<1x32xf32>
    %100 = arith.maximumf %98, %99 : vector<1x32xf32>
    %c8_74 = arith.constant 8 : index
    %c0_75 = arith.constant 0 : index
    %101 = vector.load %arg9[%c8_74, %c0_75] : memref<16x32xf32, #tpu.memory_space<vmem>>, vector<1x32xf32>
    %c9_76 = arith.constant 9 : index
    %c0_77 = arith.constant 0 : index
    %102 = vector.load %arg9[%c9_76, %c0_77] : memref<16x32xf32, #tpu.memory_space<vmem>>, vector<1x32xf32>
    %103 = arith.maximumf %101, %102 : vector<1x32xf32>
    %104 = arith.maximumf %100, %103 : vector<1x32xf32>
    %c0_78 = arith.constant 0 : index
    %c0_79 = arith.constant 0 : index
    %c0_80 = arith.constant 0 : index
    %105 = vector.load %arg6[%c0_78, %c0_79, %c0_80] : memref<1x1x32xf32, #tpu.memory_space<vmem>>, vector<1x1x32xf32>
    %106 = vector.shape_cast %105 : vector<1x1x32xf32> to vector<1x32xf32>
    %107 = vector.shape_cast %104 : vector<1x32xf32> to vector<1x1x32xf32>
    tpu.vector_store %arg6[%c0_78, %c0_79, %c0_80], %107 {strides = array<i32>} : memref<1x1x32xf32, #tpu.memory_space<vmem>>, vector<1x1x32xf32>,
    return
  }
  func.func @transform_0(%arg0: i32) -> (i32, i32) {
    %c0_i32 = arith.constant 0 : i32
    %c0_i32_0 = arith.constant 0 : i32
    return %arg0, %c0_i32 : i32, i32
  }
  func.func @transform_1(%arg0: i32) -> (i32, i32) {
    %c0_i32 = arith.constant 0 : i32
    %c0_i32_0 = arith.constant 0 : i32
    %c0_i32_1 = arith.constant 0 : i32
    return %c0_i32, %c0_i32_0 : i32, i32
  }
  func.func @transform_2(%arg0: i32) -> (i32, i32) {
    %c0_i32 = arith.constant 0 : i32
    %c0_i32_0 = arith.constant 0 : i32
    %c0_i32_1 = arith.constant 0 : i32
    return %c0_i32, %c0_i32_0 : i32, i32
  }
  func.func @transform_3(%arg0: i32) -> (i32, i32) {
    %c0_i32 = arith.constant 0 : i32
    %c0_i32_0 = arith.constant 0 : i32
    %c0_i32_1 = arith.constant 0 : i32
    return %c0_i32, %c0_i32_0 : i32, i32
  }
  func.func @transform_4(%arg0: i32) -> (i32, i32) {
    %c0_i32 = arith.constant 0 : i32
    %c0_i32_0 = arith.constant 0 : i32
    %c0_i32_1 = arith.constant 0 : i32
    return %c0_i32, %c0_i32_0 : i32, i32
  }
  func.func @transform_5(%arg0: i32) -> (i32, i32, i32) {
    %c0_i32 = arith.constant 0 : i32
    %c0_i32_0 = arith.constant 0 : i32
    %c0_i32_1 = arith.constant 0 : i32
    return %arg0, %c0_i32, %c0_i32_0 : i32, i32, i32
  }
}

</mosaic_0001>

<llo_original>
// kernel: spaconv_forward.1
$region0: #{spaconv_forward.1}
  #allocation0 [shape = 'u32[]', space=smem, size = 0x4, offset = 0x4, fixed_abs, tag = 'smem constant byte address 0x4 - core index']
  #allocation1 [shape = 'u32[144,128]{1,0:T(1,128)}', space=vmem, size = 0x12000, scoped, tag = 'internal scratch']
  #allocation2 [shape = 'f32[56,64]{1,0:T(8,128)}', space=vmem, size = 0x7000, scoped, tag = 'scratch operand']
  #allocation3 [shape = 'bf16[16,1600]{1,0:T(16,128)(2,1)}', space=vmem, size = 0xd000, scoped, tag = 'scratch operand']
  #allocation4 [shape = 'f32[16,32]{1,0:T(8,128)}', space=vmem, size = 0x2000, scoped, tag = 'scratch operand']
  %s0 = inlined_call_operand.vmem [shape: bf16[384,64], index: 0, kind: input, shape index: {}]
  %s1 = inlined_call_operand.vmem [shape: bf16[64,64], index: 1, kind: input, shape index: {}]
  %s2 = inlined_call_operand.vmem [shape: f32[1,64], index: 2, kind: input, shape index: {}]
  %s3 = inlined_call_operand.vmem [shape: bf16[1600,32], index: 3, kind: input, shape index: {}]
  %s4 = inlined_call_operand.vmem [shape: f32[1,32], index: 4, kind: input, shape index: {}]
  %s5 = inlined_call_operand.hbm [shape: f32[2,1,32], index: 5, kind: output, shape index: {}]
  %s6 = sld [smem:[#allocation0]]
  $region53: #{spaconv_forward.1} parent=0
    _
  %s8 = ssub.s32 1, %s6
  %s9 = scalar_select 0, %s8, %s6
  $region1: #{spaconv_forward.1} parent=0
    #allocation5 [shape = 'u8[1024]{0}', space=vmem, size = 0x400, scoped, tag = 'output window, operand 0']
    #allocation6 [shape = 's32[2]{0}', space=sflag, size = 0x8, scoped, tag = 'scoped memory for spaconv_forward.1']
    %10 = vsyncpa [#allocation6], 0
    %s11 = scalar_lea.sflag [#allocation6], 1
    %12 = vsyncpa %s11, 0
    loop: start=0, step=1, limit=4
    $region2: #{spaconv_forward.1} parent=1 // loop_pre_header
      _
    $region3: #{spaconv_forward.1} parent=1 // loop_header
      %s14 = sphi 0, %s18
      %p15 = scmp.ge.s32.totalorder %s14, 4
      %s24 = sphi 0, %s26
      %s27 = sphi 0, %s24
      %s28 = sphi 0, %s27
      %s44 = sphi 0, %s28
      %s48 = sphi 0, %s48
      %s50 = sphi 0, %s48
      %s51 = sphi 0, %s50
      %s65 = sphi 0, %s51
      %s69 = sphi 0, %s69
      %s71 = sphi 0, %s69
      %s72 = sphi 0, %s71
      %s86 = sphi 0, %s72
      %s90 = sphi 0, %s90
      %s92 = sphi 0, %s90
      %s93 = sphi 0, %s92
      %s107 = sphi 0, %s93
      %s111 = sphi 0, %s111
      %s113 = sphi 0, %s111
      %s114 = sphi 0, %s113
      %s128 = sphi 0, %s114
      %s134 = sphi 0, %s136
      %s137 = sphi 0, %s134
      %s138 = sphi 0, %s137
      %s154 = sphi 0, %s138
    $region4: #{spaconv_forward.1} parent=1 // loop_header_branch
      %17 = sbr.rel (%p15) target = $region8
    $region5: #{spaconv_forward.1} parent=1 // loop_body
      %s19 = ssub.s32 %s14, 1
      %s20 = ssub.s32 %s14, 2
      %s21 = sadd.s32 %s14, 1
      %s22 = ssub.s32 %s14, %s21
      %p23 = scmp.eq.s32.totalorder %s22, 0
      %s25 = sadd.s32 %s24, 1
      %s26 = scalar_select %p23, %s24, %s25
      %p29 = pneg %p23
      %p30 = scmp.eq.s32.totalorder %s14, 1
      %p31 = por %p29, %p30
      %p32 = scmp.ne.s32.totalorder %s24, %s27
      %p33 = scmp.eq.s32.totalorder %s14, 0
      %p34 = por %p32, %p33
      %p35 = scmp.ne.s32.totalorder %s24, %s27
      %p36 = scmp.eq.s32.totalorder %s19, 1
      %p37 = por %p35, %p36
      %p38 = scmp.ne.s32.totalorder %s27, %s28
      %p39 = scmp.eq.s32.totalorder %s19, 0
      %p40 = por %p38, %p39
      %p41 = scmp.ne.s32.totalorder %s27, %s28
      %p42 = scmp.eq.s32.totalorder %s20, 1
      %p43 = por %p41, %p42
      %p45 = scmp.ne.s32.totalorder %s28, %s44
      %p46 = scmp.eq.s32.totalorder %s20, 0
      %p47 = por %p45, %p46
      %s49 = sadd.s32 %s48, 1
      %p52 = scmp.eq.s32.totalorder %s14, 1
      %p53 = scmp.ne.s32.totalorder %s48, %s50
      %p54 = scmp.eq.s32.totalorder %s14, 0
      %p55 = por %p53, %p54
      %p56 = scmp.ne.s32.totalorder %s48, %s50
      %p57 = scmp.eq.s32.totalorder %s19, 1
      %p58 = por %p56, %p57
      %p59 = scmp.ne.s32.totalorder %s50, %s51
      %p60 = scmp.eq.s32.totalorder %s19, 0
      %p61 = por %p59, %p60
      %p62 = scmp.ne.s32.totalorder %s50, %s51
      %p63 = scmp.eq.s32.totalorder %s20, 1
      %p64 = por %p62, %p63
      %p66 = scmp.ne.s32.totalorder %s51, %s65
      %p67 = scmp.eq.s32.totalorder %s20, 0
      %p68 = por %p66, %p67
      %s70 = sadd.s32 %s69, 1
      %p73 = scmp.eq.s32.totalorder %s14, 1
      %p74 = scmp.ne.s32.totalorder %s69, %s71
      %p75 = scmp.eq.s32.totalorder %s14, 0
      %p76 = por %p74, %p75
      %p77 = scmp.ne.s32.totalorder %s69, %s71
      %p78 = scmp.eq.s32.totalorder %s19, 1
      %p79 = por %p77, %p78
      %p80 = scmp.ne.s32.totalorder %s71, %s72
      %p81 = scmp.eq.s32.totalorder %s19, 0
      %p82 = por %p80, %p81
      %p83 = scmp.ne.s32.totalorder %s71, %s72
      %p84 = scmp.eq.s32.totalorder %s20, 1
      %p85 = por %p83, %p84
      %p87 = scmp.ne.s32.totalorder %s72, %s86
      %p88 = scmp.eq.s32.totalorder %s20, 0
      %p89 = por %p87, %p88
      %s91 = sadd.s32 %s90, 1
      %p94 = scmp.eq.s32.totalorder %s14, 1
      %p95 = scmp.ne.s32.totalorder %s90, %s92
      %p96 = scmp.eq.s32.totalorder %s14, 0
      %p97 = por %p95, %p96
      %p98 = scmp.ne.s32.totalorder %s90, %s92
      %p99 = scmp.eq.s32.totalorder %s19, 1
      %p100 = por %p98, %p99
      %p101 = scmp.ne.s32.totalorder %s92, %s93
      %p102 = scmp.eq.s32.totalorder %s19, 0
      %p103 = por %p101, %p102
      %p104 = scmp.ne.s32.totalorder %s92, %s93
      %p105 = scmp.eq.s32.totalorder %s20, 1
      %p106 = por %p104, %p105
      %p108 = scmp.ne.s32.totalorder %s93, %s107
      %p109 = scmp.eq.s32.totalorder %s20, 0
      %p110 = por %p108, %p109
      %s112 = sadd.s32 %s111, 1
      %p115 = scmp.eq.s32.totalorder %s14, 1
      %p116 = scmp.ne.s32.totalorder %s111, %s113
      %p117 = scmp.eq.s32.totalorder %s14, 0
      %p118 = por %p116, %p117
      %p119 = scmp.ne.s32.totalorder %s111, %s113
      %p120 = scmp.eq.s32.totalorder %s19, 1
      %p121 = por %p119, %p120
      %p122 = scmp.ne.s32.totalorder %s113, %s114
      %p123 = scmp.eq.s32.totalorder %s19, 0
      %p124 = por %p122, %p123
      %p125 = scmp.ne.s32.totalorder %s113, %s114
      %p126 = scmp.eq.s32.totalorder %s20, 1
      %p127 = por %p125, %p126
      %p129 = scmp.ne.s32.totalorder %s114, %s128
      %p130 = scmp.eq.s32.totalorder %s20, 0
      %p131 = por %p129, %p130
      %s132 = ssub.s32 %s14, %s21
      %p133 = scmp.eq.s32.totalorder %s132, 0
      %s135 = sadd.s32 %s134, 1
      %s136 = scalar_select %p133, %s134, %s135
      %p139 = pneg %p133
      %p140 = scmp.eq.s32.totalorder %s14, 1
      %p141 = por %p139, %p140
      %p142 = scmp.ne.s32.totalorder %s134, %s137
      %p143 = scmp.eq.s32.totalorder %s14, 0
      %p144 = por %p142, %p143
      %p145 = scmp.ne.s32.totalorder %s134, %s137
      %p146 = scmp.eq.s32.totalorder %s19, 1
      %p147 = por %p145, %p146
      %p148 = scmp.ne.s32.totalorder %s137, %s138
      %p149 = scmp.eq.s32.totalorder %s19, 0
      %p150 = por %p148, %p149
      %p151 = scmp.ne.s32.totalorder %s137, %s138
      %p152 = scmp.eq.s32.totalorder %s20, 1
      %p153 = por %p151, %p152
      %p155 = scmp.ne.s32.totalorder %s138, %s154
      %p156 = scmp.eq.s32.totalorder %s20, 0
      %p157 = por %p155, %p156
      %p158 = scmp.le.s32.totalorder 1, %s14
      %p159 = scmp.lt.s32.totalorder %s14, 3
      %p160 = pnand %p158, %p159
      %p161 = pneg %p160
      // Predicated region
      $region9: #{spaconv_forward.1} parent=5 // pred_check
        _
      $region10: #{spaconv_forward.1} parent=5 // pred_check_branch
        %163 = sbr.rel (%p160) target = $region12
      $region11: #{spaconv_forward.1} parent=5 // pred_region
        %s164 = ssub.s32 %s14, 1
        // Predicated region
        $region13: #{spaconv_forward.1} parent=11 // pred_check
          %p165 = pneg %p61
        $region14: #{spaconv_forward.1} parent=11 // pred_check_branch
          %167 = sbr.rel (%p165) target = $region16
        $region15: #{spaconv_forward.1} parent=11 // pred_region
          _
        $region16: #{spaconv_forward.1} parent=11 // pred_fallthru
          _
        // Predicated region
        $region17: #{spaconv_forward.1} parent=11 // pred_check
          %p168 = pneg %p82
        $region18: #{spaconv_forward.1} parent=11 // pred_check_branch
          %170 = sbr.rel (%p168) target = $region20
        $region19: #{spaconv_forward.1} parent=11 // pred_region
          _
        $region20: #{spaconv_forward.1} parent=11 // pred_fallthru
          _
        // Predicated region
        $region21: #{spaconv_forward.1} parent=11 // pred_check
          %p171 = pneg %p103
        $region22: #{spaconv_forward.1} parent=11 // pred_check_branch
          %173 = sbr.rel (%p171) target = $region24
        $region23: #{spaconv_forward.1} parent=11 // pred_region
          _
        $region24: #{spaconv_forward.1} parent=11 // pred_fallthru
          _
        // Predicated region
        $region25: #{spaconv_forward.1} parent=11 // pred_check
          %p174 = pneg %p124
        $region26: #{spaconv_forward.1} parent=11 // pred_check_branch
          %176 = sbr.rel (%p174) target = $region28
        $region27: #{spaconv_forward.1} parent=11 // pred_region
          _
        $region28: #{spaconv_forward.1} parent=11 // pred_fallthru
          _
      $region12: #{spaconv_forward.1} parent=5 // pred_fallthru
        _
      %p177 = scmp.lt.s32.totalorder %s14, 2
      // Predicated region
      $region29: #{spaconv_forward.1} parent=5 // pred_check
        %p178 = pneg %p177
      $region30: #{spaconv_forward.1} parent=5 // pred_check_branch
        %180 = sbr.rel (%p178) target = $region32
      $region31: #{spaconv_forward.1} parent=5 // pred_region
        // Predicated region
        $region33: #{spaconv_forward.1} parent=31 // pred_check
          %p181 = pneg %p34
        $region34: #{spaconv_forward.1} parent=31 // pred_check_branch
          %183 = sbr.rel (%p181) target = $region36
        $region35: #{spaconv_forward.1} parent=31 // pred_region
          %s184 = smul.u32 24, %s14
          %p185 = scmp.lt.s32.totalorder %s184, 47
          %s186 = scalar_select %p185, %s184, 47
          %s187 = smul.addr %s186, 4
          %s188 = scalar_lea.vmem %s0, %s187
          %s189 = smul.u32 24, %s14
        $region36: #{spaconv_forward.1} parent=31 // pred_fallthru
          _
      $region32: #{spaconv_forward.1} parent=5 // pred_fallthru
        _
      %p190 = scmp.le.s32.totalorder 1, %s14
      %p191 = scmp.lt.s32.totalorder %s14, 3
      %p192 = pnand %p190, %p191
      %p193 = pneg %p192
      // Predicated region
      $region37: #{spaconv_forward.1} parent=5 // pred_check
        _
      $region38: #{spaconv_forward.1} parent=5 // pred_check_branch
        %195 = sbr.rel (%p192) target = $region40
      $region39: #{spaconv_forward.1} parent=5 // pred_region
        %s196 = ssub.s32 %s14, 1
        %s197 = smul.u32 24, %s19
        %p198 = scmp.lt.s32.totalorder %s197, 47
        %s199 = scalar_select %p198, %s197, 47
        %s200 = smul.addr %s199, 4
        %s201 = scalar_lea.vmem %s0, %s200
        %p202 = pneg %p40
        %p203 = pneg %p37
        %p204 = pneg %p61
        %p205 = pneg %p58
        %p206 = pneg %p82
        %p207 = pneg %p79
        %p208 = pneg %p103
        %p209 = pneg %p100
        %p210 = pneg %p124
        %p211 = pneg %p121
        %p212 = pneg %p150
        %p213 = pneg %p147
        %s214 = sand.u32 %s137, 1
        %s215 = scalar_lea.sflag [#allocation6], %s214
        %s216 = sand.u32 %s137, 1
        %s217 = scalar_lea.vmem [#allocation5], %s216
        %s218 = smul.u32 24, %s19
        %p219 = scmp.lt.s32.totalorder %s218, 47
        %s220 = scalar_select %p219, %s218, 47
        %s221 = smul.addr %s220, 4
        %s222 = scalar_lea.vmem %s0, %s221
        %s223 = smul.u32 24, %s19
        %v225 = vld [vmem:[%s222] sm:$0xf]
        %v226 = vld [vmem:[%s222 + $0x4] sm:$0xf]
        %v227 = vld [vmem:[%s222 + $0x8] sm:$0xf]
        %v228 = vld [vmem:[%s222 + $0xc] sm:$0xf]
        %v229 = vld [vmem:[%s222 + $0x10] sm:$0xf]
        %v230 = vld [vmem:[%s222 + $0x14] sm:$0xf]
        %v231 = vld [vmem:[%s222 + $0x18] sm:$0xf]
        %v232 = vld [vmem:[%s222 + $0x1c] sm:$0xf]
        %v233 = vld [vmem:[%s222 + $0x20] sm:$0xf]
        %v234 = vld [vmem:[%s222 + $0x24] sm:$0xf]
        %v235 = vld [vmem:[%s222 + $0x28] sm:$0xf]
        %v236 = vld [vmem:[%s222 + $0x2c] sm:$0xf]
        %v237 = vld [vmem:[%s222 + $0x30] sm:$0xf]
        %v238 = vld [vmem:[%s222 + $0x34] sm:$0xf]
        %v239 = vld [vmem:[%s222 + $0x38] sm:$0xf]
        %v240 = vld [vmem:[%s222 + $0x3c] sm:$0xf]
        %v241 = vld [vmem:[%s222 + $0x40] sm:$0xf]
        %v242 = vld [vmem:[%s222 + $0x44] sm:$0xf]
        %v243 = vld [vmem:[%s222 + $0x48] sm:$0xf]
        %v244 = vld [vmem:[%s222 + $0x4c] sm:$0xf]
        %v245 = vld [vmem:[%s222 + $0x50] sm:$0xf]
        %v246 = vld [vmem:[%s222 + $0x54] sm:$0xf]
        %v247 = vld [vmem:[%s222 + $0x58] sm:$0xf]
        %v248 = vld [vmem:[%s222 + $0x5c] sm:$0xf]
        %v249 = vld [vmem:[%s1] sm:$0xf]
        %v250 = vld [vmem:[%s1 + $0x4] sm:$0xf]
        %v251 = vld [vmem:[%s1 + $0x8] sm:$0xf]
        %v252 = vld [vmem:[%s1 + $0xc] sm:$0xf]
        %v253 = vld [vmem:[%s1 + $0x10] sm:$0xf]
        %v254 = vld [vmem:[%s1 + $0x14] sm:$0xf]
        %v255 = vld [vmem:[%s1 + $0x18] sm:$0xf]
        %v256 = vld [vmem:[%s1 + $0x1c] sm:$0xf]
        %v257 = vld [vmem:[%s2] sm:$0x1]
        %v259 = vlaneseq
        %v260 = vshrl.u32 %v259, 7
        %v261 = vsub.s32 0, %v260
        %v262 = vrot.slane %v257, %v261
        %v288 = vunpack.c.l.b16 %v225
        %v289 = vunpack.c.l.b16 %v226
        %v290 = vunpack.c.l.b16 %v227
        %v291 = vunpack.c.l.b16 %v228
        %v292 = vunpack.c.l.b16 %v229
        %v293 = vunpack.c.l.b16 %v230
        %v294 = vunpack.c.l.b16 %v231
        %v295 = vunpack.c.l.b16 %v232
        %v296 = vunpack.c.l.b16 %v233
        %v297 = vunpack.c.l.b16 %v234
        %v298 = vunpack.c.l.b16 %v235
        %v299 = vunpack.c.l.b16 %v236
        %v300 = vunpack.c.l.b16 %v237
        %v301 = vunpack.c.l.b16 %v238
        %v302 = vunpack.c.l.b16 %v239
        %v303 = vunpack.c.l.b16 %v240
        %v304 = vunpack.c.l.b16 %v241
        %v305 = vunpack.c.l.b16 %v242
        %v306 = vunpack.c.l.b16 %v243
        %v307 = vunpack.c.l.b16 %v244
        %v308 = vunpack.c.l.b16 %v245
        %v309 = vunpack.c.l.b16 %v246
        %v310 = vunpack.c.l.b16 %v247
        %v311 = vunpack.c.l.b16 %v248
        %v312 = vpack.c.b16 %v289, %v288
        %v313 = vpack.c.b16 %v291, %v290
        %v314 = vpack.c.b16 %v293, %v292
        %v315 = vpack.c.b16 %v295, %v294
        %v316 = vpack.c.b16 %v297, %v296
        %v317 = vpack.c.b16 %v299, %v298
        %v318 = vpack.c.b16 %v301, %v300
        %v319 = vpack.c.b16 %v303, %v302
        %v320 = vpack.c.b16 %v305, %v304
        %v321 = vpack.c.b16 %v307, %v306
        %v322 = vpack.c.b16 %v309, %v308
        %v323 = vpack.c.b16 %v311, %v310
        %v332 = vunpack.c.l.b16 %v249
        %v333 = vunpack.c.l.b16 %v250
        %v334 = vunpack.c.l.b16 %v251
        %v335 = vunpack.c.l.b16 %v252
        %v336 = vunpack.c.l.b16 %v253
        %v337 = vunpack.c.l.b16 %v254
        %v338 = vunpack.c.l.b16 %v255
        %v339 = vunpack.c.l.b16 %v256
        %v340 = vpack.c.b16 %v333, %v332
        %v341 = vpack.c.b16 %v335, %v334
        %v342 = vpack.c.b16 %v337, %v336
        %v343 = vpack.c.b16 %v339, %v338
        %vm348 = vcmask 523264
        %v350 = vsel %vm348, %v312, 0
        %v353 = vsel %vm348, %v313, 0
        %v356 = vsel %vm348, %v314, 0
        %v359 = vsel %vm348, %v315, 0
        %v362 = vsel %vm348, %v316, 0
        %v365 = vsel %vm348, %v317, 0
        %v368 = vsel %vm348, %v318, 0
        %v371 = vsel %vm348, %v319, 0
        %v374 = vsel %vm348, %v320, 0
        %v377 = vsel %vm348, %v321, 0
        %v380 = vsel %vm348, %v322, 0
        %v383 = vsel %vm348, %v323, 0
        %385 = vmatprep.subr.bf16.mxu0 0
        %386 = vmatpush1.bf16.msra.mxu0 %v340
        %387 = vmatprep.subr.bf16.mxu0 0
        %388 = vmatpush1.bf16.msra.mxu0 %v341
        %389 = vmatprep.subr.bf16.mxu0 0
        %390 = vmatpush1.bf16.msra.mxu0 %v342
        %391 = vmatprep.subr.bf16.mxu0 0
        %392 = vmatpush1.bf16.msra.mxu0 %v343
        %393 = vmatprep.subr.bf16.mxu0 0
        %394 = vmatpush1.bf16.msra.mxu0 0
        %395 = vmatprep.subr.bf16.mxu0 0
        %396 = vmatpush1.bf16.msra.mxu0 0
        %397 = vmatprep.subr.bf16.mxu0 0
        %398 = vmatpush1.bf16.msra.mxu0 0
        %399 = vmatprep.subr.bf16.mxu0 0
        %400 = vmatpush1.bf16.msra.mxu0 0
        %401 = vmatprep.subr.bf16.mxu0 0
        %402 = vmatpush1.bf16.msra.mxu0 0
        %403 = vmatprep.subr.bf16.mxu0 0
        %404 = vmatpush1.bf16.msra.mxu0 0
        %405 = vmatprep.subr.bf16.mxu0 0
        %406 = vmatpush1.bf16.msra.mxu0 0
        %407 = vmatprep.subr.bf16.mxu0 0
        %408 = vmatpush1.bf16.msra.mxu0 0
        %409 = vmatprep.subr.bf16.mxu0 0
        %410 = vmatpush1.bf16.msra.mxu0 0
        %411 = vmatprep.subr.bf16.mxu0 0
        %412 = vmatpush1.bf16.msra.mxu0 0
        %413 = vmatprep.subr.bf16.mxu0 0
        %414 = vmatpush1.bf16.msra.mxu0 0
        %415 = vmatprep.subr.bf16.mxu0 0
        %416 = vmatpush1.bf16.msra.mxu0 0
        %417 = vmatprep.mubr.bf16.mxu0 0
        %418 = vmatmul.mubr.bf16.gmra.mrb[0].mxu0 %v350
        %v419 = vpop.f32.mrb[0].mxu0
        %v420 = vadd.f32 %v262, %v419
        %v421 = vpop.f32.mrb[0].mxu0
        %v422 = vpop.f32.mrb[0].mxu0
        %v423 = vadd.f32 %v262, %v422
        %v424 = vpop.f32.mrb[0].mxu0
        %425 = vmatprep.mubr.bf16.mxu0 0
        %426 = vmatmul.mubr.bf16.gmra.mrb[0].mxu0 %v353
        %v427 = vpop.f32.mrb[0].mxu0
        %v428 = vadd.f32 %v262, %v427
        %v429 = vpop.f32.mrb[0].mxu0
        %v430 = vpop.f32.mrb[0].mxu0
        %v431 = vadd.f32 %v262, %v430
        %v432 = vpop.f32.mrb[0].mxu0
        %433 = vmatprep.mubr.bf16.mxu0 0
        %434 = vmatmul.mubr.bf16.gmra.mrb[0].mxu0 %v356
        %v435 = vpop.f32.mrb[0].mxu0
        %v436 = vadd.f32 %v262, %v435
        %v437 = vpop.f32.mrb[0].mxu0
        %v438 = vpop.f32.mrb[0].mxu0
        %v439 = vadd.f32 %v262, %v438
        %v440 = vpop.f32.mrb[0].mxu0
        %441 = vmatprep.mubr.bf16.mxu0 0
        %442 = vmatmul.mubr.bf16.gmra.mrb[0].mxu0 %v359
        %v443 = vpop.f32.mrb[0].mxu0
        %v444 = vadd.f32 %v262, %v443
        %v445 = vpop.f32.mrb[0].mxu0
        %v446 = vpop.f32.mrb[0].mxu0
        %v447 = vadd.f32 %v262, %v446
        %v448 = vpop.f32.mrb[0].mxu0
        %449 = vmatprep.mubr.bf16.mxu0 0
        %450 = vmatmul.mubr.bf16.gmra.mrb[0].mxu0 %v362
        %v451 = vpop.f32.mrb[0].mxu0
        %v452 = vadd.f32 %v262, %v451
        %v453 = vpop.f32.mrb[0].mxu0
        %v454 = vpop.f32.mrb[0].mxu0
        %v455 = vadd.f32 %v262, %v454
        %v456 = vpop.f32.mrb[0].mxu0
        %457 = vmatprep.mubr.bf16.mxu0 0
        %458 = vmatmul.mubr.bf16.gmra.mrb[0].mxu0 %v365
        %v459 = vpop.f32.mrb[0].mxu0
        %v460 = vadd.f32 %v262, %v459
        %v461 = vpop.f32.mrb[0].mxu0
        %v462 = vpop.f32.mrb[0].mxu0
        %v463 = vadd.f32 %v262, %v462
        %v464 = vpop.f32.mrb[0].mxu0
        %465 = vmatprep.mubr.bf16.mxu0 0
        %466 = vmatmul.mubr.bf16.gmra.mrb[0].mxu0 %v368
        %v467 = vpop.f32.mrb[0].mxu0
        %v468 = vadd.f32 %v262, %v467
        %v469 = vpop.f32.mrb[0].mxu0
        %v470 = vpop.f32.mrb[0].mxu0
        %v471 = vadd.f32 %v262, %v470
        %v472 = vpop.f32.mrb[0].mxu0
        %473 = vmatprep.mubr.bf16.mxu0 0
        %474 = vmatmul.mubr.bf16.gmra.mrb[0].mxu0 %v371
        %v475 = vpop.f32.mrb[0].mxu0
        %v476 = vadd.f32 %v262, %v475
        %v477 = vpop.f32.mrb[0].mxu0
        %v478 = vpop.f32.mrb[0].mxu0
        %v479 = vadd.f32 %v262, %v478
        %v480 = vpop.f32.mrb[0].mxu0
        %481 = vmatprep.mubr.bf16.mxu0 0
        %482 = vmatmul.mubr.bf16.gmra.mrb[0].mxu0 %v374
        %v483 = vpop.f32.mrb[0].mxu0
        %v484 = vadd.f32 %v262, %v483
        %v485 = vpop.f32.mrb[0].mxu0
        %v486 = vpop.f32.mrb[0].mxu0
        %v487 = vadd.f32 %v262, %v486
        %v488 = vpop.f32.mrb[0].mxu0
        %489 = vmatprep.mubr.bf16.mxu0 0
        %490 = vmatmul.mubr.bf16.gmra.mrb[0].mxu0 %v377
        %v491 = vpop.f32.mrb[0].mxu0
        %v492 = vadd.f32 %v262, %v491
        %v493 = vpop.f32.mrb[0].mxu0
        %v494 = vpop.f32.mrb[0].mxu0
        %v495 = vadd.f32 %v262, %v494
        %v496 = vpop.f32.mrb[0].mxu0
        %497 = vmatprep.mubr.bf16.mxu0 0
        %498 = vmatmul.mubr.bf16.gmra.mrb[0].mxu0 %v380
        %v499 = vpop.f32.mrb[0].mxu0
        %v500 = vadd.f32 %v262, %v499
        %v501 = vpop.f32.mrb[0].mxu0
        %v502 = vpop.f32.mrb[0].mxu0
        %v503 = vadd.f32 %v262, %v502
        %v504 = vpop.f32.mrb[0].mxu0
        %505 = vmatprep.mubr.bf16.mxu0 0
        %506 = vmatmul.mubr.bf16.gmra.mrb[0].mxu0 %v383
        %v507 = vpop.f32.mrb[0].mxu0
        %v508 = vadd.f32 %v262, %v507
        %v509 = vpop.f32.mrb[0].mxu0
        %v510 = vpop.f32.mrb[0].mxu0
        %v511 = vadd.f32 %v262, %v510
        %v512 = vpop.f32.mrb[0].mxu0
        %513 = vdwg.mxu0
        %v514 = vmax.f32 %v420, %v444
        %v515 = vmax.f32 %v423, %v447
        %v516 = vmax.f32 %v428, %v452
        %v517 = vmax.f32 %v431, %v455
        %v518 = vmax.f32 %v436, %v460
        %v519 = vmax.f32 %v439, %v463
        %v520 = vmax.f32 %v468, %v492
        %v521 = vmax.f32 %v471, %v495
        %v522 = vmax.f32 %v476, %v500
        %v523 = vmax.f32 %v479, %v503
        %v524 = vmax.f32 %v484, %v508
        %v525 = vmax.f32 %v487, %v511
        %v526 = vmax.f32 %v514, %v520
        %v527 = vmax.f32 %v515, %v521
        %v528 = vmax.f32 %v516, %v522
        %v529 = vmax.f32 %v517, %v523
        %v530 = vmax.f32 %v518, %v524
        %v531 = vmax.f32 %v519, %v525
        %532 = vst.msk [vmem:[#allocation2] sm:$0xff] %vm348, %v526
        %533 = vst.msk [vmem:[#allocation2 + $0x8] sm:$0xff] %vm348, %v527
        %534 = vst.msk [vmem:[#allocation2 + $0x10] sm:$0xff] %vm348, %v528
        %535 = vst.msk [vmem:[#allocation2 + $0x18] sm:$0xff] %vm348, %v529
        %536 = vst.msk [vmem:[#allocation2 + $0x20] sm:$0xff] %vm348, %v530
        %537 = vst.msk [vmem:[#allocation2 + $0x28] sm:$0xff] %vm348, %v531
        %538 = vst.msk [vmem:[#allocation2 + $0x30] sm:$0xff] %vm348, 0.0
        %v539 = vld [vmem:[#allocation2] sm:$0xff]
        %v540 = vld [vmem:[#allocation2 + $0x8] sm:$0xff]
        %v541 = vpack.c.bf16 %v540, %v539
        %542 = vst.msk [vmem:[#allocation3] sm:$0xff] %vm348, %v541
        %v543 = vld [vmem:[#allocation2 + $0x1] sm:$0xff]
        %v544 = vld [vmem:[#allocation2 + $0x9] sm:$0xff]
        %v545 = vpack.c.bf16 %v544, %v543
        %547 = vrot.lane.b32.xlu0 %v545, 64
        %v548 = vpop.permute.xlu0 %547
        %vm550 = vcmask 1048064
        %551 = vst.msk [vmem:[#allocation3] sm:$0xff] %vm550, %v548
        %v552 = vld [vmem:[#allocation2 + $0x2] sm:$0xff]
        %v553 = vld [vmem:[#allocation2 + $0xa] sm:$0xff]
        %v554 = vpack.c.bf16 %v553, %v552
        %555 = vst.msk [vmem:[#allocation3 + $0x8] sm:$0xff] %vm348, %v554
        %v556 = vld [vmem:[#allocation2 + $0x3] sm:$0xff]
        %v557 = vld [vmem:[#allocation2 + $0xb] sm:$0xff]
        %v558 = vpack.c.bf16 %v557, %v556
        %560 = vrot.lane.b32.xlu0 %v558, 64
        %v561 = vpop.permute.xlu0 %560
        %563 = vst.msk [vmem:[#allocation3 + $0x8] sm:$0xff] %vm550, %v561
        %v564 = vld [vmem:[#allocation2 + $0x4] sm:$0xff]
        %v565 = vld [vmem:[#allocation2 + $0xc] sm:$0xff]
        %v566 = vpack.c.bf16 %v565, %v564
        %567 = vst.msk [vmem:[#allocation3 + $0x10] sm:$0xff] %vm348, %v566
        %v568 = vld [vmem:[#allocation2 + $0x8] sm:$0xff]
        %v569 = vld [vmem:[#allocation2 + $0x10] sm:$0xff]
        %v570 = vpack.c.bf16 %v569, %v568
        %572 = vrot.lane.b32.xlu0 %v570, 64
        %v573 = vpop.permute.xlu0 %572
        %575 = vst.msk [vmem:[#allocation3 + $0x10] sm:$0xff] %vm550, %v573
        %v576 = vld [vmem:[#allocation2 + $0x9] sm:$0xff]
        %v577 = vld [vmem:[#allocation2 + $0x11] sm:$0xff]
        %v578 = vpack.c.bf16 %v577, %v576
        %579 = vst.msk [vmem:[#allocation3 + $0x18] sm:$0xff] %vm348, %v578
        %v580 = vld [vmem:[#allocation2 + $0xa] sm:$0xff]
        %v581 = vld [vmem:[#allocation2 + $0x12] sm:$0xff]
        %v582 = vpack.c.bf16 %v581, %v580
        %584 = vrot.lane.b32.xlu0 %v582, 64
        %v585 = vpop.permute.xlu0 %584
        %587 = vst.msk [vmem:[#allocation3 + $0x18] sm:$0xff] %vm550, %v585
        %v588 = vld [vmem:[#allocation2 + $0xb] sm:$0xff]
        %v589 = vld [vmem:[#allocation2 + $0x13] sm:$0xff]
        %v590 = vpack.c.bf16 %v589, %v588
        %591 = vst.msk [vmem:[#allocation3 + $0x20] sm:$0xff] %vm348, %v590
        %v592 = vld [vmem:[#allocation2 + $0xc] sm:$0xff]
        %v593 = vld [vmem:[#allocation2 + $0x14] sm:$0xff]
        %v594 = vpack.c.bf16 %v593, %v592
        %596 = vrot.lane.b32.xlu0 %v594, 64
        %v597 = vpop.permute.xlu0 %596
        %599 = vst.msk [vmem:[#allocation3 + $0x20] sm:$0xff] %vm550, %v597
        %v600 = vld [vmem:[#allocation2 + $0x10] sm:$0xff]
        %v601 = vld [vmem:[#allocation2 + $0x18] sm:$0xff]
        %v602 = vpack.c.bf16 %v601, %v600
        %603 = vst.msk [vmem:[#allocation3 + $0x28] sm:$0xff] %vm348, %v602
        %v604 = vld [vmem:[#allocation2 + $0x11] sm:$0xff]
        %v605 = vld [vmem:[#allocation2 + $0x19] sm:$0xff]
        %v606 = vpack.c.bf16 %v605, %v604
        %608 = vrot.lane.b32.xlu0 %v606, 64
        %v609 = vpop.permute.xlu0 %608
        %611 = vst.msk [vmem:[#allocation3 + $0x28] sm:$0xff] %vm550, %v609
        %v612 = vld [vmem:[#allocation2 + $0x12] sm:$0xff]
        %v613 = vld [vmem:[#allocation2 + $0x1a] sm:$0xff]
        %v614 = vpack.c.bf16 %v613, %v612
        %615 = vst.msk [vmem:[#allocation3 + $0x30] sm:$0xff] %vm348, %v614
        %v616 = vld [vmem:[#allocation2 + $0x13] sm:$0xff]
        %v617 = vld [vmem:[#allocation2 + $0x1b] sm:$0xff]
        %v618 = vpack.c.bf16 %v617, %v616
        %620 = vrot.lane.b32.xlu0 %v618, 64
        %v621 = vpop.permute.xlu0 %620
        %623 = vst.msk [vmem:[#allocation3 + $0x30] sm:$0xff] %vm550, %v621
        %v624 = vld [vmem:[#allocation2 + $0x14] sm:$0xff]
        %v625 = vld [vmem:[#allocation2 + $0x1c] sm:$0xff]
        %v626 = vpack.c.bf16 %v625, %v624
        %627 = vst.msk [vmem:[#allocation3 + $0x38] sm:$0xff] %vm348, %v626
        %v628 = vld [vmem:[#allocation2 + $0x18] sm:$0xff]
        %v629 = vld [vmem:[#allocation2 + $0x20] sm:$0xff]
        %v630 = vpack.c.bf16 %v629, %v628
        %632 = vrot.lane.b32.xlu0 %v630, 64
        %v633 = vpop.permute.xlu0 %632
        %635 = vst.msk [vmem:[#allocation3 + $0x38] sm:$0xff] %vm550, %v633
        %v636 = vld [vmem:[#allocation2 + $0x19] sm:$0xff]
        %v637 = vld [vmem:[#allocation2 + $0x21] sm:$0xff]
        %v638 = vpack.c.bf16 %v637, %v636
        %639 = vst.msk [vmem:[#allocation3 + $0x40] sm:$0xff] %vm348, %v638
        %v640 = vld [vmem:[#allocation2 + $0x1a] sm:$0xff]
        %v641 = vld [vmem:[#allocation2 + $0x22] sm:$0xff]
        %v642 = vpack.c.bf16 %v641, %v640
        %644 = vrot.lane.b32.xlu0 %v642, 64
        %v645 = vpop.permute.xlu0 %644
        %647 = vst.msk [vmem:[#allocation3 + $0x40] sm:$0xff] %vm550, %v645
        %v648 = vld [vmem:[#allocation2 + $0x1b] sm:$0xff]
        %v649 = vld [vmem:[#allocation2 + $0x23] sm:$0xff]
        %v650 = vpack.c.bf16 %v649, %v648
        %651 = vst.msk [vmem:[#allocation3 + $0x48] sm:$0xff] %vm348, %v650
        %v652 = vld [vmem:[#allocation2 + $0x1c] sm:$0xff]
        %v653 = vld [vmem:[#allocation2 + $0x24] sm:$0xff]
        %v654 = vpack.c.bf16 %v653, %v652
        %656 = vrot.lane.b32.xlu0 %v654, 64
        %v657 = vpop.permute.xlu0 %656
        %659 = vst.msk [vmem:[#allocation3 + $0x48] sm:$0xff] %vm550, %v657
        %v660 = vld [vmem:[#allocation2 + $0x20] sm:$0xff]
        %v661 = vld [vmem:[#allocation2 + $0x28] sm:$0xff]
        %v662 = vpack.c.bf16 %v661, %v660
        %663 = vst.msk [vmem:[#allocation3 + $0x50] sm:$0xff] %vm348, %v662
        %v664 = vld [vmem:[#allocation2 + $0x21] sm:$0xff]
        %v665 = vld [vmem:[#allocation2 + $0x29] sm:$0xff]
        %v666 = vpack.c.bf16 %v665, %v664
        %668 = vrot.lane.b32.xlu0 %v666, 64
        %v669 = vpop.permute.xlu0 %668
        %671 = vst.msk [vmem:[#allocation3 + $0x50] sm:$0xff] %vm550, %v669
        %v672 = vld [vmem:[#allocation2 + $0x22] sm:$0xff]
        %v673 = vld [vmem:[#allocation2 + $0x2a] sm:$0xff]
        %v674 = vpack.c.bf16 %v673, %v672
        %675 = vst.msk [vmem:[#allocation3 + $0x58] sm:$0xff] %vm348, %v674
        %v676 = vld [vmem:[#allocation2 + $0x23] sm:$0xff]
        %v677 = vld [vmem:[#allocation2 + $0x2b] sm:$0xff]
        %v678 = vpack.c.bf16 %v677, %v676
        %680 = vrot.lane.b32.xlu0 %v678, 64
        %v681 = vpop.permute.xlu0 %680
        %683 = vst.msk [vmem:[#allocation3 + $0x58] sm:$0xff] %vm550, %v681
        %v684 = vld [vmem:[#allocation2 + $0x24] sm:$0xff]
        %v685 = vld [vmem:[#allocation2 + $0x2c] sm:$0xff]
        %v686 = vpack.c.bf16 %v685, %v684
        %687 = vst.msk [vmem:[#allocation3 + $0x60] sm:$0xff] %vm348, %v686
        %v688 = vld [vmem:[#allocation3] sm:$0xff]
        %v689 = vld [vmem:[#allocation3 + $0x8] sm:$0xff]
        %v690 = vld [vmem:[#allocation3 + $0x10] sm:$0xff]
        %v691 = vld [vmem:[#allocation3 + $0x18] sm:$0xff]
        %v692 = vld [vmem:[#allocation3 + $0x20] sm:$0xff]
        %v693 = vld [vmem:[#allocation3 + $0x28] sm:$0xff]
        %v694 = vld [vmem:[#allocation3 + $0x30] sm:$0xff]
        %v695 = vld [vmem:[#allocation3 + $0x38] sm:$0xff]
        %v696 = vld [vmem:[#allocation3 + $0x40] sm:$0xff]
        %v697 = vld [vmem:[#allocation3 + $0x48] sm:$0xff]
        %v698 = vld [vmem:[#allocation3 + $0x50] sm:$0xff]
        %v699 = vld [vmem:[#allocation3 + $0x58] sm:$0xff]
        %v700 = vld [vmem:[#allocation3 + $0x60] sm:$0xff]
        %v701 = vld [vmem:[%s3] sm:$0xf]
        %v702 = vld [vmem:[%s3 + $0x4] sm:$0xf]
        %v703 = vld [vmem:[%s3 + $0x8] sm:$0xf]
        %v704 = vld [vmem:[%s3 + $0xc] sm:$0xf]
        %v705 = vld [vmem:[%s3 + $0x10] sm:$0xf]
        %v706 = vld [vmem:[%s3 + $0x14] sm:$0xf]
        %v707 = vld [vmem:[%s3 + $0x18] sm:$0xf]
        %v708 = vld [vmem:[%s3 + $0x1c] sm:$0xf]
        %v709 = vld [vmem:[%s3 + $0x20] sm:$0xf]
        %v710 = vld [vmem:[%s3 + $0x24] sm:$0xf]
        %v711 = vld [vmem:[%s3 + $0x28] sm:$0xf]
        %v712 = vld [vmem:[%s3 + $0x2c] sm:$0xf]
        %v713 = vld [vmem:[%s3 + $0x30] sm:$0xf]
        %v714 = vld [vmem:[%s3 + $0x34] sm:$0xf]
        %v715 = vld [vmem:[%s3 + $0x38] sm:$0xf]
        %v716 = vld [vmem:[%s3 + $0x3c] sm:$0xf]
        %v717 = vld [vmem:[%s3 + $0x40] sm:$0xf]
        %v718 = vld [vmem:[%s3 + $0x44] sm:$0xf]
        %v719 = vld [vmem:[%s3 + $0x48] sm:$0xf]
        %v720 = vld [vmem:[%s3 + $0x4c] sm:$0xf]
        %v721 = vld [vmem:[%s3 + $0x50] sm:$0xf]
        %v722 = vld [vmem:[%s3 + $0x54] sm:$0xf]
        %v723 = vld [vmem:[%s3 + $0x58] sm:$0xf]
        %v724 = vld [vmem:[%s3 + $0x5c] sm:$0xf]
        %v725 = vld [vmem:[%s3 + $0x60] sm:$0xf]
        %v726 = vld [vmem:[%s3 + $0x64] sm:$0xf]
        %v727 = vld [vmem:[%s3 + $0x68] sm:$0xf]
        %v728 = vld [vmem:[%s3 + $0x6c] sm:$0xf]
        %v729 = vld [vmem:[%s3 + $0x70] sm:$0xf]
        %v730 = vld [vmem:[%s3 + $0x74] sm:$0xf]
        %v731 = vld [vmem:[%s3 + $0x78] sm:$0xf]
        %v732 = vld [vmem:[%s3 + $0x7c] sm:$0xf]
        %v733 = vld [vmem:[%s3 + $0x80] sm:$0xf]
        %v734 = vld [vmem:[%s3 + $0x84] sm:$0xf]
        %v735 = vld [vmem:[%s3 + $0x88] sm:$0xf]
        %v736 = vld [vmem:[%s3 + $0x8c] sm:$0xf]
        %v737 = vld [vmem:[%s3 + $0x90] sm:$0xf]
        %v738 = vld [vmem:[%s3 + $0x94] sm:$0xf]
        %v739 = vld [vmem:[%s3 + $0x98] sm:$0xf]
        %v740 = vld [vmem:[%s3 + $0x9c] sm:$0xf]
        %v741 = vld [vmem:[%s3 + $0xa0] sm:$0xf]
        %v742 = vld [vmem:[%s3 + $0xa4] sm:$0xf]
        %v743 = vld [vmem:[%s3 + $0xa8] sm:$0xf]
        %v744 = vld [vmem:[%s3 + $0xac] sm:$0xf]
        %v745 = vld [vmem:[%s3 + $0xb0] sm:$0xf]
        %v746 = vld [vmem:[%s3 + $0xb4] sm:$0xf]
        %v747 = vld [vmem:[%s3 + $0xb8] sm:$0xf]
        %v748 = vld [vmem:[%s3 + $0xbc] sm:$0xf]
        %v749 = vld [vmem:[%s3 + $0xc0] sm:$0xf]
        %v750 = vld [vmem:[%s3 + $0xc4] sm:$0xf]
        %v751 = vld [vmem:[%s3 + $0xc8] sm:$0xf]
        %v752 = vld [vmem:[%s3 + $0xcc] sm:$0xf]
        %v753 = vld [vmem:[%s3 + $0xd0] sm:$0xf]
        %v754 = vld [vmem:[%s3 + $0xd4] sm:$0xf]
        %v755 = vld [vmem:[%s3 + $0xd8] sm:$0xf]
        %v756 = vld [vmem:[%s3 + $0xdc] sm:$0xf]
        %v757 = vld [vmem:[%s3 + $0xe0] sm:$0xf]
        %v758 = vld [vmem:[%s3 + $0xe4] sm:$0xf]
        %v759 = vld [vmem:[%s3 + $0xe8] sm:$0xf]
        %v760 = vld [vmem:[%s3 + $0xec] sm:$0xf]
        %v761 = vld [vmem:[%s3 + $0xf0] sm:$0xf]
        %v762 = vld [vmem:[%s3 + $0xf4] sm:$0xf]
        %v763 = vld [vmem:[%s3 + $0xf8] sm:$0xf]
        %v764 = vld [vmem:[%s3 + $0xfc] sm:$0xf]
        %v765 = vld [vmem:[%s3 + $0x100] sm:$0xf]
        %v766 = vld [vmem:[%s3 + $0x104] sm:$0xf]
        %v767 = vld [vmem:[%s3 + $0x108] sm:$0xf]
        %v768 = vld [vmem:[%s3 + $0x10c] sm:$0xf]
        %v769 = vld [vmem:[%s3 + $0x110] sm:$0xf]
        %v770 = vld [vmem:[%s3 + $0x114] sm:$0xf]
        %v771 = vld [vmem:[%s3 + $0x118] sm:$0xf]
        %v772 = vld [vmem:[%s3 + $0x11c] sm:$0xf]
        %v773 = vld [vmem:[%s3 + $0x120] sm:$0xf]
        %v774 = vld [vmem:[%s3 + $0x124] sm:$0xf]
        %v775 = vld [vmem:[%s3 + $0x128] sm:$0xf]
        %v776 = vld [vmem:[%s3 + $0x12c] sm:$0xf]
        %v777 = vld [vmem:[%s3 + $0x130] sm:$0xf]
        %v778 = vld [vmem:[%s3 + $0x134] sm:$0xf]
        %v779 = vld [vmem:[%s3 + $0x138] sm:$0xf]
        %v780 = vld [vmem:[%s3 + $0x13c] sm:$0xf]
        %v781 = vld [vmem:[%s3 + $0x140] sm:$0xf]
        %v782 = vld [vmem:[%s3 + $0x144] sm:$0xf]
        %v783 = vld [vmem:[%s3 + $0x148] sm:$0xf]
        %v784 = vld [vmem:[%s3 + $0x14c] sm:$0xf]
        %v785 = vld [vmem:[%s3 + $0x150] sm:$0xf]
        %v786 = vld [vmem:[%s3 + $0x154] sm:$0xf]
        %v787 = vld [vmem:[%s3 + $0x158] sm:$0xf]
        %v788 = vld [vmem:[%s3 + $0x15c] sm:$0xf]
        %v789 = vld [vmem:[%s3 + $0x160] sm:$0xf]
        %v790 = vld [vmem:[%s3 + $0x164] sm:$0xf]
        %v791 = vld [vmem:[%s3 + $0x168] sm:$0xf]
        %v792 = vld [vmem:[%s3 + $0x16c] sm:$0xf]
        %v793 = vld [vmem:[%s3 + $0x170] sm:$0xf]
        %v794 = vld [vmem:[%s3 + $0x174] sm:$0xf]
        %v795 = vld [vmem:[%s3 + $0x178] sm:$0xf]
        %v796 = vld [vmem:[%s3 + $0x17c] sm:$0xf]
        %v797 = vld [vmem:[%s3 + $0x180] sm:$0xf]
        %v798 = vld [vmem:[%s3 + $0x184] sm:$0xf]
        %v799 = vld [vmem:[%s3 + $0x188] sm:$0xf]
        %v800 = vld [vmem:[%s3 + $0x18c] sm:$0xf]
        %v801 = vld [vmem:[%s3 + $0x190] sm:$0xf]
        %v802 = vld [vmem:[%s3 + $0x194] sm:$0xf]
        %v803 = vld [vmem:[%s3 + $0x198] sm:$0xf]
        %v804 = vld [vmem:[%s3 + $0x19c] sm:$0xf]
        %v805 = vld [vmem:[%s3 + $0x1a0] sm:$0xf]
        %v806 = vld [vmem:[%s3 + $0x1a4] sm:$0xf]
        %v807 = vld [vmem:[%s3 + $0x1a8] sm:$0xf]
        %v808 = vld [vmem:[%s3 + $0x1ac] sm:$0xf]
        %v809 = vld [vmem:[%s3 + $0x1b0] sm:$0xf]
        %v810 = vld [vmem:[%s3 + $0x1b4] sm:$0xf]
        %v811 = vld [vmem:[%s3 + $0x1b8] sm:$0xf]
        %v812 = vld [vmem:[%s3 + $0x1bc] sm:$0xf]
        %v813 = vld [vmem:[%s3 + $0x1c0] sm:$0xf]
        %v814 = vld [vmem:[%s3 + $0x1c4] sm:$0xf]
        %v815 = vld [vmem:[%s3 + $0x1c8] sm:$0xf]
        %v816 = vld [vmem:[%s3 + $0x1cc] sm:$0xf]
        %v817 = vld [vmem:[%s3 + $0x1d0] sm:$0xf]
        %v818 = vld [vmem:[%s3 + $0x1d4] sm:$0xf]
        %v819 = vld [vmem:[%s3 + $0x1d8] sm:$0xf]
        %v820 = vld [vmem:[%s3 + $0x1dc] sm:$0xf]
        %v821 = vld [vmem:[%s3 + $0x1e0] sm:$0xf]
        %v822 = vld [vmem:[%s3 + $0x1e4] sm:$0xf]
        %v823 = vld [vmem:[%s3 + $0x1e8] sm:$0xf]
        %v824 = vld [vmem:[%s3 + $0x1ec] sm:$0xf]
        %v825 = vld [vmem:[%s3 + $0x1f0] sm:$0xf]
        %v826 = vld [vmem:[%s3 + $0x1f4] sm:$0xf]
        %v827 = vld [vmem:[%s3 + $0x1f8] sm:$0xf]
        %v828 = vld [vmem:[%s3 + $0x1fc] sm:$0xf]
        %v829 = vld [vmem:[%s3 + $0x200] sm:$0xf]
        %v830 = vld [vmem:[%s3 + $0x204] sm:$0xf]
        %v831 = vld [vmem:[%s3 + $0x208] sm:$0xf]
        %v832 = vld [vmem:[%s3 + $0x20c] sm:$0xf]
        %v833 = vld [vmem:[%s3 + $0x210] sm:$0xf]
        %v834 = vld [vmem:[%s3 + $0x214] sm:$0xf]
        %v835 = vld [vmem:[%s3 + $0x218] sm:$0xf]
        %v836 = vld [vmem:[%s3 + $0x21c] sm:$0xf]
        %v837 = vld [vmem:[%s3 + $0x220] sm:$0xf]
        %v838 = vld [vmem:[%s3 + $0x224] sm:$0xf]
        %v839 = vld [vmem:[%s3 + $0x228] sm:$0xf]
        %v840 = vld [vmem:[%s3 + $0x22c] sm:$0xf]
        %v841 = vld [vmem:[%s3 + $0x230] sm:$0xf]
        %v842 = vld [vmem:[%s3 + $0x234] sm:$0xf]
        %v843 = vld [vmem:[%s3 + $0x238] sm:$0xf]
        %v844 = vld [vmem:[%s3 + $0x23c] sm:$0xf]
        %v845 = vld [vmem:[%s3 + $0x240] sm:$0xf]
        %v846 = vld [vmem:[%s3 + $0x244] sm:$0xf]
        %v847 = vld [vmem:[%s3 + $0x248] sm:$0xf]
        %v848 = vld [vmem:[%s3 + $0x24c] sm:$0xf]
        %v849 = vld [vmem:[%s3 + $0x250] sm:$0xf]
        %v850 = vld [vmem:[%s3 + $0x254] sm:$0xf]
        %v851 = vld [vmem:[%s3 + $0x258] sm:$0xf]
        %v852 = vld [vmem:[%s3 + $0x25c] sm:$0xf]
        %v853 = vld [vmem:[%s3 + $0x260] sm:$0xf]
        %v854 = vld [vmem:[%s3 + $0x264] sm:$0xf]
        %v855 = vld [vmem:[%s3 + $0x268] sm:$0xf]
        %v856 = vld [vmem:[%s3 + $0x26c] sm:$0xf]
        %v857 = vld [vmem:[%s3 + $0x270] sm:$0xf]
        %v858 = vld [vmem:[%s3 + $0x274] sm:$0xf]
        %v859 = vld [vmem:[%s3 + $0x278] sm:$0xf]
        %v860 = vld [vmem:[%s3 + $0x27c] sm:$0xf]
        %v861 = vld [vmem:[%s3 + $0x280] sm:$0xf]
        %v862 = vld [vmem:[%s3 + $0x284] sm:$0xf]
        %v863 = vld [vmem:[%s3 + $0x288] sm:$0xf]
        %v864 = vld [vmem:[%s3 + $0x28c] sm:$0xf]
        %v865 = vld [vmem:[%s3 + $0x290] sm:$0xf]
        %v866 = vld [vmem:[%s3 + $0x294] sm:$0xf]
        %v867 = vld [vmem:[%s3 + $0x298] sm:$0xf]
        %v868 = vld [vmem:[%s3 + $0x29c] sm:$0xf]
        %v869 = vld [vmem:[%s3 + $0x2a0] sm:$0xf]
        %v870 = vld [vmem:[%s3 + $0x2a4] sm:$0xf]
        %v871 = vld [vmem:[%s3 + $0x2a8] sm:$0xf]
        %v872 = vld [vmem:[%s3 + $0x2ac] sm:$0xf]
        %v873 = vld [vmem:[%s3 + $0x2b0] sm:$0xf]
        %v874 = vld [vmem:[%s3 + $0x2b4] sm:$0xf]
        %v875 = vld [vmem:[%s3 + $0x2b8] sm:$0xf]
        %v876 = vld [vmem:[%s3 + $0x2bc] sm:$0xf]
        %v877 = vld [vmem:[%s3 + $0x2c0] sm:$0xf]
        %v878 = vld [vmem:[%s3 + $0x2c4] sm:$0xf]
        %v879 = vld [vmem:[%s3 + $0x2c8] sm:$0xf]
        %v880 = vld [vmem:[%s3 + $0x2cc] sm:$0xf]
        %v881 = vld [vmem:[%s3 + $0x2d0] sm:$0xf]
        %v882 = vld [vmem:[%s3 + $0x2d4] sm:$0xf]
        %v883 = vld [vmem:[%s3 + $0x2d8] sm:$0xf]
        %v884 = vld [vmem:[%s3 + $0x2dc] sm:$0xf]
        %v885 = vld [vmem:[%s3 + $0x2e0] sm:$0xf]
        %v886 = vld [vmem:[%s3 + $0x2e4] sm:$0xf]
        %v887 = vld [vmem:[%s3 + $0x2e8] sm:$0xf]
        %v888 = vld [vmem:[%s3 + $0x2ec] sm:$0xf]
        %v889 = vld [vmem:[%s3 + $0x2f0] sm:$0xf]
        %v890 = vld [vmem:[%s3 + $0x2f4] sm:$0xf]
        %v891 = vld [vmem:[%s3 + $0x2f8] sm:$0xf]
        %v892 = vld [vmem:[%s3 + $0x2fc] sm:$0xf]
        %v893 = vld [vmem:[%s3 + $0x300] sm:$0xf]
        %v894 = vld [vmem:[%s3 + $0x304] sm:$0xf]
        %v895 = vld [vmem:[%s3 + $0x308] sm:$0xf]
        %v896 = vld [vmem:[%s3 + $0x30c] sm:$0xf]
        %v897 = vld [vmem:[%s3 + $0x310] sm:$0xf]
        %v898 = vld [vmem:[%s3 + $0x314] sm:$0xf]
        %v899 = vld [vmem:[%s3 + $0x318] sm:$0xf]
        %v900 = vld [vmem:[%s3 + $0x31c] sm:$0xf]
        %v901 = vld [vmem:[%s4] sm:$0x1]
        %v903 = vlaneseq
        %v904 = vshrl.u32 %v903, 7
        %v905 = vsub.s32 0, %v904
        %v906 = vrot.slane %v901, %v905
        %v1108 = vunpack.c.l.b16 %v701
        %v1109 = vunpack.c.l.b16 %v702
        %v1110 = vunpack.c.l.b16 %v703
        %v1111 = vunpack.c.l.b16 %v704
        %v1112 = vunpack.c.l.b16 %v705
        %v1113 = vunpack.c.l.b16 %v706
        %v1114 = vunpack.c.l.b16 %v707
        %v1115 = vunpack.c.l.b16 %v708
        %v1116 = vunpack.c.l.b16 %v709
        %v1117 = vunpack.c.l.b16 %v710
        %v1118 = vunpack.c.l.b16 %v711
        %v1119 = vunpack.c.l.b16 %v712
        %v1120 = vunpack.c.l.b16 %v713
        %v1121 = vunpack.c.l.b16 %v714
        %v1122 = vunpack.c.l.b16 %v715
        %v1123 = vunpack.c.l.b16 %v716
        %v1124 = vunpack.c.l.b16 %v717
        %v1125 = vunpack.c.l.b16 %v718
        %v1126 = vunpack.c.l.b16 %v719
        %v1127 = vunpack.c.l.b16 %v720
        %v1128 = vunpack.c.l.b16 %v721
        %v1129 = vunpack.c.l.b16 %v722
        %v1130 = vunpack.c.l.b16 %v723
        %v1131 = vunpack.c.l.b16 %v724
        %v1132 = vunpack.c.l.b16 %v725
        %v1133 = vunpack.c.l.b16 %v726
        %v1134 = vunpack.c.l.b16 %v727
        %v1135 = vunpack.c.l.b16 %v728
        %v1136 = vunpack.c.l.b16 %v729
        %v1137 = vunpack.c.l.b16 %v730
        %v1138 = vunpack.c.l.b16 %v731
        %v1139 = vunpack.c.l.b16 %v732
        %v1140 = vunpack.c.l.b16 %v733
        %v1141 = vunpack.c.l.b16 %v734
        %v1142 = vunpack.c.l.b16 %v735
        %v1143 = vunpack.c.l.b16 %v736
        %v1144 = vunpack.c.l.b16 %v737
        %v1145 = vunpack.c.l.b16 %v738
        %v1146 = vunpack.c.l.b16 %v739
        %v1147 = vunpack.c.l.b16 %v740
        %v1148 = vunpack.c.l.b16 %v741
        %v1149 = vunpack.c.l.b16 %v742
        %v1150 = vunpack.c.l.b16 %v743
        %v1151 = vunpack.c.l.b16 %v744
        %v1152 = vunpack.c.l.b16 %v745
        %v1153 = vunpack.c.l.b16 %v746
        %v1154 = vunpack.c.l.b16 %v747
        %v1155 = vunpack.c.l.b16 %v748
        %v1156 = vunpack.c.l.b16 %v749
        %v1157 = vunpack.c.l.b16 %v750
        %v1158 = vunpack.c.l.b16 %v751
        %v1159 = vunpack.c.l.b16 %v752
        %v1160 = vunpack.c.l.b16 %v753
        %v1161 = vunpack.c.l.b16 %v754
        %v1162 = vunpack.c.l.b16 %v755
        %v1163 = vunpack.c.l.b16 %v756
        %v1164 = vunpack.c.l.b16 %v757
        %v1165 = vunpack.c.l.b16 %v758
        %v1166 = vunpack.c.l.b16 %v759
        %v1167 = vunpack.c.l.b16 %v760
        %v1168 = vunpack.c.l.b16 %v761
        %v1169 = vunpack.c.l.b16 %v762
        %v1170 = vunpack.c.l.b16 %v763
        %v1171 = vunpack.c.l.b16 %v764
        %v1172 = vunpack.c.l.b16 %v765
        %v1173 = vunpack.c.l.b16 %v766
        %v1174 = vunpack.c.l.b16 %v767
        %v1175 = vunpack.c.l.b16 %v768
        %v1176 = vunpack.c.l.b16 %v769
        %v1177 = vunpack.c.l.b16 %v770
        %v1178 = vunpack.c.l.b16 %v771
        %v1179 = vunpack.c.l.b16 %v772
        %v1180 = vunpack.c.l.b16 %v773
        %v1181 = vunpack.c.l.b16 %v774
        %v1182 = vunpack.c.l.b16 %v775
        %v1183 = vunpack.c.l.b16 %v776
        %v1184 = vunpack.c.l.b16 %v777
        %v1185 = vunpack.c.l.b16 %v778
        %v1186 = vunpack.c.l.b16 %v779
        %v1187 = vunpack.c.l.b16 %v780
        %v1188 = vunpack.c.l.b16 %v781
        %v1189 = vunpack.c.l.b16 %v782
        %v1190 = vunpack.c.l.b16 %v783
        %v1191 = vunpack.c.l.b16 %v784
        %v1192 = vunpack.c.l.b16 %v785
        %v1193 = vunpack.c.l.b16 %v786
        %v1194 = vunpack.c.l.b16 %v787
        %v1195 = vunpack.c.l.b16 %v788
        %v1196 = vunpack.c.l.b16 %v789
        %v1197 = vunpack.c.l.b16 %v790
        %v1198 = vunpack.c.l.b16 %v791
        %v1199 = vunpack.c.l.b16 %v792
        %v1200 = vunpack.c.l.b16 %v793
        %v1201 = vunpack.c.l.b16 %v794
        %v1202 = vunpack.c.l.b16 %v795
        %v1203 = vunpack.c.l.b16 %v796
        %v1204 = vunpack.c.l.b16 %v797
        %v1205 = vunpack.c.l.b16 %v798
        %v1206 = vunpack.c.l.b16 %v799
        %v1207 = vunpack.c.l.b16 %v800
        %v1208 = vunpack.c.l.b16 %v801
        %v1209 = vunpack.c.l.b16 %v802
        %v1210 = vunpack.c.l.b16 %v803
        %v1211 = vunpack.c.l.b16 %v804
        %v1212 = vunpack.c.l.b16 %v805
        %v1213 = vunpack.c.l.b16 %v806
        %v1214 = vunpack.c.l.b16 %v807
        %v1215 = vunpack.c.l.b16 %v808
        %v1216 = vunpack.c.l.b16 %v809
        %v1217 = vunpack.c.l.b16 %v810
        %v1218 = vunpack.c.l.b16 %v811
        %v1219 = vunpack.c.l.b16 %v812
        %v1220 = vunpack.c.l.b16 %v813
        %v1221 = vunpack.c.l.b16 %v814
        %v1222 = vunpack.c.l.b16 %v815
        %v1223 = vunpack.c.l.b16 %v816
        %v1224 = vunpack.c.l.b16 %v817
        %v1225 = vunpack.c.l.b16 %v818
        %v1226 = vunpack.c.l.b16 %v819
        %v1227 = vunpack.c.l.b16 %v820
        %v1228 = vunpack.c.l.b16 %v821
        %v1229 = vunpack.c.l.b16 %v822
        %v1230 = vunpack.c.l.b16 %v823
        %v1231 = vunpack.c.l.b16 %v824
        %v1232 = vunpack.c.l.b16 %v825
        %v1233 = vunpack.c.l.b16 %v826
        %v1234 = vunpack.c.l.b16 %v827
        %v1235 = vunpack.c.l.b16 %v828
        %v1236 = vunpack.c.l.b16 %v829
        %v1237 = vunpack.c.l.b16 %v830
        %v1238 = vunpack.c.l.b16 %v831
        %v1239 = vunpack.c.l.b16 %v832
        %v1240 = vunpack.c.l.b16 %v833
        %v1241 = vunpack.c.l.b16 %v834
        %v1242 = vunpack.c.l.b16 %v835
        %v1243 = vunpack.c.l.b16 %v836
        %v1244 = vunpack.c.l.b16 %v837
        %v1245 = vunpack.c.l.b16 %v838
        %v1246 = vunpack.c.l.b16 %v839
        %v1247 = vunpack.c.l.b16 %v840
        %v1248 = vunpack.c.l.b16 %v841
        %v1249 = vunpack.c.l.b16 %v842
        %v1250 = vunpack.c.l.b16 %v843
        %v1251 = vunpack.c.l.b16 %v844
        %v1252 = vunpack.c.l.b16 %v845
        %v1253 = vunpack.c.l.b16 %v846
        %v1254 = vunpack.c.l.b16 %v847
        %v1255 = vunpack.c.l.b16 %v848
        %v1256 = vunpack.c.l.b16 %v849
        %v1257 = vunpack.c.l.b16 %v850
        %v1258 = vunpack.c.l.b16 %v851
        %v1259 = vunpack.c.l.b16 %v852
        %v1260 = vunpack.c.l.b16 %v853
        %v1261 = vunpack.c.l.b16 %v854
        %v1262 = vunpack.c.l.b16 %v855
        %v1263 = vunpack.c.l.b16 %v856
        %v1264 = vunpack.c.l.b16 %v857
        %v1265 = vunpack.c.l.b16 %v858
        %v1266 = vunpack.c.l.b16 %v859
        %v1267 = vunpack.c.l.b16 %v860
        %v1268 = vunpack.c.l.b16 %v861
        %v1269 = vunpack.c.l.b16 %v862
        %v1270 = vunpack.c.l.b16 %v863
        %v1271 = vunpack.c.l.b16 %v864
        %v1272 = vunpack.c.l.b16 %v865
        %v1273 = vunpack.c.l.b16 %v866
        %v1274 = vunpack.c.l.b16 %v867
        %v1275 = vunpack.c.l.b16 %v868
        %v1276 = vunpack.c.l.b16 %v869
        %v1277 = vunpack.c.l.b16 %v870
        %v1278 = vunpack.c.l.b16 %v871
        %v1279 = vunpack.c.l.b16 %v872
        %v1280 = vunpack.c.l.b16 %v873
        %v1281 = vunpack.c.l.b16 %v874
        %v1282 = vunpack.c.l.b16 %v875
        %v1283 = vunpack.c.l.b16 %v876
        %v1284 = vunpack.c.l.b16 %v877
        %v1285 = vunpack.c.l.b16 %v878
        %v1286 = vunpack.c.l.b16 %v879
        %v1287 = vunpack.c.l.b16 %v880
        %v1288 = vunpack.c.l.b16 %v881
        %v1289 = vunpack.c.l.b16 %v882
        %v1290 = vunpack.c.l.b16 %v883
        %v1291 = vunpack.c.l.b16 %v884
        %v1292 = vunpack.c.l.b16 %v885
        %v1293 = vunpack.c.l.b16 %v886
        %v1294 = vunpack.c.l.b16 %v887
        %v1295 = vunpack.c.l.b16 %v888
        %v1296 = vunpack.c.l.b16 %v889
        %v1297 = vunpack.c.l.b16 %v890
        %v1298 = vunpack.c.l.b16 %v891
        %v1299 = vunpack.c.l.b16 %v892
        %v1300 = vunpack.c.l.b16 %v893
        %v1301 = vunpack.c.l.b16 %v894
        %v1302 = vunpack.c.l.b16 %v895
        %v1303 = vunpack.c.l.b16 %v896
        %v1304 = vunpack.c.l.b16 %v897
        %v1305 = vunpack.c.l.b16 %v898
        %v1306 = vunpack.c.l.b16 %v899
        %v1307 = vunpack.c.l.b16 %v900
        %v1308 = vpack.c.b16 %v1109, %v1108
        %v1309 = vpack.c.b16 %v1111, %v1110
        %v1310 = vpack.c.b16 %v1113, %v1112
        %v1311 = vpack.c.b16 %v1115, %v1114
        %v1312 = vpack.c.b16 %v1117, %v1116
        %v1313 = vpack.c.b16 %v1119, %v1118
        %v1314 = vpack.c.b16 %v1121, %v1120
        %v1315 = vpack.c.b16 %v1123, %v1122
        %v1316 = vpack.c.b16 %v1125, %v1124
        %v1317 = vpack.c.b16 %v1127, %v1126
        %v1318 = vpack.c.b16 %v1129, %v1128
        %v1319 = vpack.c.b16 %v1131, %v1130
        %v1320 = vpack.c.b16 %v1133, %v1132
        %v1321 = vpack.c.b16 %v1135, %v1134
        %v1322 = vpack.c.b16 %v1137, %v1136
        %v1323 = vpack.c.b16 %v1139, %v1138
        %v1324 = vpack.c.b16 %v1141, %v1140
        %v1325 = vpack.c.b16 %v1143, %v1142
        %v1326 = vpack.c.b16 %v1145, %v1144
        %v1327 = vpack.c.b16 %v1147, %v1146
        %v1328 = vpack.c.b16 %v1149, %v1148
        %v1329 = vpack.c.b16 %v1151, %v1150
        %v1330 = vpack.c.b16 %v1153, %v1152
        %v1331 = vpack.c.b16 %v1155, %v1154
        %v1332 = vpack.c.b16 %v1157, %v1156
        %v1333 = vpack.c.b16 %v1159, %v1158
        %v1334 = vpack.c.b16 %v1161, %v1160
        %v1335 = vpack.c.b16 %v1163, %v1162
        %v1336 = vpack.c.b16 %v1165, %v1164
        %v1337 = vpack.c.b16 %v1167, %v1166
        %v1338 = vpack.c.b16 %v1169, %v1168
        %v1339 = vpack.c.b16 %v1171, %v1170
        %v1340 = vpack.c.b16 %v1173, %v1172
        %v1341 = vpack.c.b16 %v1175, %v1174
        %v1342 = vpack.c.b16 %v1177, %v1176
        %v1343 = vpack.c.b16 %v1179, %v1178
        %v1344 = vpack.c.b16 %v1181, %v1180
        %v1345 = vpack.c.b16 %v1183, %v1182
        %v1346 = vpack.c.b16 %v1185, %v1184
        %v1347 = vpack.c.b16 %v1187, %v1186
        %v1348 = vpack.c.b16 %v1189, %v1188
        %v1349 = vpack.c.b16 %v1191, %v1190
        %v1350 = vpack.c.b16 %v1193, %v1192
        %v1351 = vpack.c.b16 %v1195, %v1194
        %v1352 = vpack.c.b16 %v1197, %v1196
        %v1353 = vpack.c.b16 %v1199, %v1198
        %v1354 = vpack.c.b16 %v1201, %v1200
        %v1355 = vpack.c.b16 %v1203, %v1202
        %v1356 = vpack.c.b16 %v1205, %v1204
        %v1357 = vpack.c.b16 %v1207, %v1206
        %v1358 = vpack.c.b16 %v1209, %v1208
        %v1359 = vpack.c.b16 %v1211, %v1210
        %v1360 = vpack.c.b16 %v1213, %v1212
        %v1361 = vpack.c.b16 %v1215, %v1214
        %v1362 = vpack.c.b16 %v1217, %v1216
        %v1363 = vpack.c.b16 %v1219, %v1218
        %v1364 = vpack.c.b16 %v1221, %v1220
        %v1365 = vpack.c.b16 %v1223, %v1222
        %v1366 = vpack.c.b16 %v1225, %v1224
        %v1367 = vpack.c.b16 %v1227, %v1226
        %v1368 = vpack.c.b16 %v1229, %v1228
        %v1369 = vpack.c.b16 %v1231, %v1230
        %v1370 = vpack.c.b16 %v1233, %v1232
        %v1371 = vpack.c.b16 %v1235, %v1234
        %v1372 = vpack.c.b16 %v1237, %v1236
        %v1373 = vpack.c.b16 %v1239, %v1238
        %v1374 = vpack.c.b16 %v1241, %v1240
        %v1375 = vpack.c.b16 %v1243, %v1242
        %v1376 = vpack.c.b16 %v1245, %v1244
        %v1377 = vpack.c.b16 %v1247, %v1246
        %v1378 = vpack.c.b16 %v1249, %v1248
        %v1379 = vpack.c.b16 %v1251, %v1250
        %v1380 = vpack.c.b16 %v1253, %v1252
        %v1381 = vpack.c.b16 %v1255, %v1254
        %v1382 = vpack.c.b16 %v1257, %v1256
        %v1383 = vpack.c.b16 %v1259, %v1258
        %v1384 = vpack.c.b16 %v1261, %v1260
        %v1385 = vpack.c.b16 %v1263, %v1262
        %v1386 = vpack.c.b16 %v1265, %v1264
        %v1387 = vpack.c.b16 %v1267, %v1266
        %v1388 = vpack.c.b16 %v1269, %v1268
        %v1389 = vpack.c.b16 %v1271, %v1270
        %v1390 = vpack.c.b16 %v1273, %v1272
        %v1391 = vpack.c.b16 %v1275, %v1274
        %v1392 = vpack.c.b16 %v1277, %v1276
        %v1393 = vpack.c.b16 %v1279, %v1278
        %v1394 = vpack.c.b16 %v1281, %v1280
        %v1395 = vpack.c.b16 %v1283, %v1282
        %v1396 = vpack.c.b16 %v1285, %v1284
        %v1397 = vpack.c.b16 %v1287, %v1286
        %v1398 = vpack.c.b16 %v1289, %v1288
        %v1399 = vpack.c.b16 %v1291, %v1290
        %v1400 = vpack.c.b16 %v1293, %v1292
        %v1401 = vpack.c.b16 %v1295, %v1294
        %v1402 = vpack.c.b16 %v1297, %v1296
        %v1403 = vpack.c.b16 %v1299, %v1298
        %v1404 = vpack.c.b16 %v1301, %v1300
        %v1405 = vpack.c.b16 %v1303, %v1302
        %v1406 = vpack.c.b16 %v1305, %v1304
        %v1407 = vpack.c.b16 %v1307, %v1306
        %v1509 = vsel %vm348, %v700, 0
        %1511 = vmatprep.subr.bf16.mxu0 0
        %1512 = vmatpush1.bf16.msra.mxu0 %v1308
        %1513 = vmatprep.subr.bf16.mxu0 0
        %1514 = vmatpush1.bf16.msra.mxu0 %v1309
        %1515 = vmatprep.subr.bf16.mxu0 0
        %1516 = vmatpush1.bf16.msra.mxu0 %v1310
        %1517 = vmatprep.subr.bf16.mxu0 0
        %1518 = vmatpush1.bf16.msra.mxu0 %v1311
        %1519 = vmatprep.subr.bf16.mxu0 0
        %1520 = vmatpush1.bf16.msra.mxu0 %v1312
        %1521 = vmatprep.subr.bf16.mxu0 0
        %1522 = vmatpush1.bf16.msra.mxu0 %v1313
        %1523 = vmatprep.subr.bf16.mxu0 0
        %1524 = vmatpush1.bf16.msra.mxu0 %v1314
        %1525 = vmatprep.subr.bf16.mxu0 0
        %1526 = vmatpush1.bf16.msra.mxu0 %v1315
        %1527 = vmatprep.subr.bf16.mxu0 0
        %1528 = vmatpush1.bf16.msra.mxu0 %v1316
        %1529 = vmatprep.subr.bf16.mxu0 0
        %1530 = vmatpush1.bf16.msra.mxu0 %v1317
        %1531 = vmatprep.subr.bf16.mxu0 0
        %1532 = vmatpush1.bf16.msra.mxu0 %v1318
        %1533 = vmatprep.subr.bf16.mxu0 0
        %1534 = vmatpush1.bf16.msra.mxu0 %v1319
        %1535 = vmatprep.subr.bf16.mxu0 0
        %1536 = vmatpush1.bf16.msra.mxu0 %v1320
        %1537 = vmatprep.subr.bf16.mxu0 0
        %1538 = vmatpush1.bf16.msra.mxu0 %v1321
        %1539 = vmatprep.subr.bf16.mxu0 0
        %1540 = vmatpush1.bf16.msra.mxu0 %v1322
        %1541 = vmatprep.subr.bf16.mxu0 0
        %1542 = vmatpush1.bf16.msra.mxu0 %v1323
        %1543 = vmatprep.mubr.bf16.mxu0 %v689
        %1544 = vmatmul.mubr.bf16.gmra.mrb[0].mxu0 %v688
        %v1545 = vpop.f32.mrb[0].mxu0
        %v1546 = vadd.f32 %v906, %v1545
        %v1547 = vpop.f32.mrb[0].mxu0
        %v1548 = vpop.f32.mrb[0].mxu0
        %v1549 = vadd.f32 %v906, %v1548
        %v1550 = vpop.f32.mrb[0].mxu0
        %1551 = vdwg.mxu0
        %1552 = vmatprep.subr.bf16.mxu0 0
        %1553 = vmatpush1.bf16.msra.mxu0 %v1324
        %1554 = vmatprep.subr.bf16.mxu0 0
        %1555 = vmatpush1.bf16.msra.mxu0 %v1325
        %1556 = vmatprep.subr.bf16.mxu0 0
        %1557 = vmatpush1.bf16.msra.mxu0 %v1326
        %1558 = vmatprep.subr.bf16.mxu0 0
        %1559 = vmatpush1.bf16.msra.mxu0 %v1327
        %1560 = vmatprep.subr.bf16.mxu0 0
        %1561 = vmatpush1.bf16.msra.mxu0 %v1328
        %1562 = vmatprep.subr.bf16.mxu0 0
        %1563 = vmatpush1.bf16.msra.mxu0 %v1329
        %1564 = vmatprep.subr.bf16.mxu0 0
        %1565 = vmatpush1.bf16.msra.mxu0 %v1330
        %1566 = vmatprep.subr.bf16.mxu0 0
        %1567 = vmatpush1.bf16.msra.mxu0 %v1331
        %1568 = vmatprep.subr.bf16.mxu0 0
        %1569 = vmatpush1.bf16.msra.mxu0 %v1332
        %1570 = vmatprep.subr.bf16.mxu0 0
        %1571 = vmatpush1.bf16.msra.mxu0 %v1333
        %1572 = vmatprep.subr.bf16.mxu0 0
        %1573 = vmatpush1.bf16.msra.mxu0 %v1334
        %1574 = vmatprep.subr.bf16.mxu0 0
        %1575 = vmatpush1.bf16.msra.mxu0 %v1335
        %1576 = vmatprep.subr.bf16.mxu0 0
        %1577 = vmatpush1.bf16.msra.mxu0 %v1336
        %1578 = vmatprep.subr.bf16.mxu0 0
        %1579 = vmatpush1.bf16.msra.mxu0 %v1337
        %1580 = vmatprep.subr.bf16.mxu0 0
        %1581 = vmatpush1.bf16.msra.mxu0 %v1338
        %1582 = vmatprep.subr.bf16.mxu0 0
        %1583 = vmatpush1.bf16.msra.mxu0 %v1339
        %1584 = vmatprep.mubr.bf16.mxu0 %v691
        %1585 = vmatmul.mubr.bf16.gmra.mrb[0].mxu0 %v690
        %v1586 = vpop.f32.mrb[0].mxu0
        %v1587 = vadd.f32 %v1546, %v1586
        %v1588 = vpop.f32.mrb[0].mxu0
        %v1589 = vpop.f32.mrb[0].mxu0
        %v1590 = vadd.f32 %v1549, %v1589
        %v1591 = vpop.f32.mrb[0].mxu0
        %1592 = vdwg.mxu0
        %1593 = vmatprep.subr.bf16.mxu0 0
        %1594 = vmatpush1.bf16.msra.mxu0 %v1340
        %1595 = vmatprep.subr.bf16.mxu0 0
        %1596 = vmatpush1.bf16.msra.mxu0 %v1341
        %1597 = vmatprep.subr.bf16.mxu0 0
        %1598 = vmatpush1.bf16.msra.mxu0 %v1342
        %1599 = vmatprep.subr.bf16.mxu0 0
        %1600 = vmatpush1.bf16.msra.mxu0 %v1343
        %1601 = vmatprep.subr.bf16.mxu0 0
        %1602 = vmatpush1.bf16.msra.mxu0 %v1344
        %1603 = vmatprep.subr.bf16.mxu0 0
        %1604 = vmatpush1.bf16.msra.mxu0 %v1345
        %1605 = vmatprep.subr.bf16.mxu0 0
        %1606 = vmatpush1.bf16.msra.mxu0 %v1346
        %1607 = vmatprep.subr.bf16.mxu0 0
        %1608 = vmatpush1.bf16.msra.mxu0 %v1347
        %1609 = vmatprep.subr.bf16.mxu0 0
        %1610 = vmatpush1.bf16.msra.mxu0 %v1348
        %1611 = vmatprep.subr.bf16.mxu0 0
        %1612 = vmatpush1.bf16.msra.mxu0 %v1349
        %1613 = vmatprep.subr.bf16.mxu0 0
        %1614 = vmatpush1.bf16.msra.mxu0 %v1350
        %1615 = vmatprep.subr.bf16.mxu0 0
        %1616 = vmatpush1.bf16.msra.mxu0 %v1351
        %1617 = vmatprep.subr.bf16.mxu0 0
        %1618 = vmatpush1.bf16.msra.mxu0 %v1352
        %1619 = vmatprep.subr.bf16.mxu0 0
        %1620 = vmatpush1.bf16.msra.mxu0 %v1353
        %1621 = vmatprep.subr.bf16.mxu0 0
        %1622 = vmatpush1.bf16.msra.mxu0 %v1354
        %1623 = vmatprep.subr.bf16.mxu0 0
        %1624 = vmatpush1.bf16.msra.mxu0 %v1355
        %1625 = vmatprep.mubr.bf16.mxu0 %v693
        %1626 = vmatmul.mubr.bf16.gmra.mrb[0].mxu0 %v692
        %v1627 = vpop.f32.mrb[0].mxu0
        %v1628 = vadd.f32 %v1587, %v1627
        %v1629 = vpop.f32.mrb[0].mxu0
        %v1630 = vpop.f32.mrb[0].mxu0
        %v1631 = vadd.f32 %v1590, %v1630
        %v1632 = vpop.f32.mrb[0].mxu0
        %1633 = vdwg.mxu0
        %1634 = vmatprep.subr.bf16.mxu0 0
        %1635 = vmatpush1.bf16.msra.mxu0 %v1356
        %1636 = vmatprep.subr.bf16.mxu0 0
        %1637 = vmatpush1.bf16.msra.mxu0 %v1357
        %1638 = vmatprep.subr.bf16.mxu0 0
        %1639 = vmatpush1.bf16.msra.mxu0 %v1358
        %1640 = vmatprep.subr.bf16.mxu0 0
        %1641 = vmatpush1.bf16.msra.mxu0 %v1359
        %1642 = vmatprep.subr.bf16.mxu0 0
        %1643 = vmatpush1.bf16.msra.mxu0 %v1360
        %1644 = vmatprep.subr.bf16.mxu0 0
        %1645 = vmatpush1.bf16.msra.mxu0 %v1361
        %1646 = vmatprep.subr.bf16.mxu0 0
        %1647 = vmatpush1.bf16.msra.mxu0 %v1362
        %1648 = vmatprep.subr.bf16.mxu0 0
        %1649 = vmatpush1.bf16.msra.mxu0 %v1363
        %1650 = vmatprep.subr.bf16.mxu0 0
        %1651 = vmatpush1.bf16.msra.mxu0 %v1364
        %1652 = vmatprep.subr.bf16.mxu0 0
        %1653 = vmatpush1.bf16.msra.mxu0 %v1365
        %1654 = vmatprep.subr.bf16.mxu0 0
        %1655 = vmatpush1.bf16.msra.mxu0 %v1366
        %1656 = vmatprep.subr.bf16.mxu0 0
        %1657 = vmatpush1.bf16.msra.mxu0 %v1367
        %1658 = vmatprep.subr.bf16.mxu0 0
        %1659 = vmatpush1.bf16.msra.mxu0 %v1368
        %1660 = vmatprep.subr.bf16.mxu0 0
        %1661 = vmatpush1.bf16.msra.mxu0 %v1369
        %1662 = vmatprep.subr.bf16.mxu0 0
        %1663 = vmatpush1.bf16.msra.mxu0 %v1370
        %1664 = vmatprep.subr.bf16.mxu0 0
        %1665 = vmatpush1.bf16.msra.mxu0 %v1371
        %1666 = vmatprep.mubr.bf16.mxu0 %v695
        %1667 = vmatmul.mubr.bf16.gmra.mrb[0].mxu0 %v694
        %v1668 = vpop.f32.mrb[0].mxu0
        %v1669 = vadd.f32 %v1628, %v1668
        %v1670 = vpop.f32.mrb[0].mxu0
        %v1671 = vpop.f32.mrb[0].mxu0
        %v1672 = vadd.f32 %v1631, %v1671
        %v1673 = vpop.f32.mrb[0].mxu0
        %1674 = vdwg.mxu0
        %1675 = vmatprep.subr.bf16.mxu0 0
        %1676 = vmatpush1.bf16.msra.mxu0 %v1372
        %1677 = vmatprep.subr.bf16.mxu0 0
        %1678 = vmatpush1.bf16.msra.mxu0 %v1373
        %1679 = vmatprep.subr.bf16.mxu0 0
        %1680 = vmatpush1.bf16.msra.mxu0 %v1374
        %1681 = vmatprep.subr.bf16.mxu0 0
        %1682 = vmatpush1.bf16.msra.mxu0 %v1375
        %1683 = vmatprep.subr.bf16.mxu0 0
        %1684 = vmatpush1.bf16.msra.mxu0 %v1376
        %1685 = vmatprep.subr.bf16.mxu0 0
        %1686 = vmatpush1.bf16.msra.mxu0 %v1377
        %1687 = vmatprep.subr.bf16.mxu0 0
        %1688 = vmatpush1.bf16.msra.mxu0 %v1378
        %1689 = vmatprep.subr.bf16.mxu0 0
        %1690 = vmatpush1.bf16.msra.mxu0 %v1379
        %1691 = vmatprep.subr.bf16.mxu0 0
        %1692 = vmatpush1.bf16.msra.mxu0 %v1380
        %1693 = vmatprep.subr.bf16.mxu0 0
        %1694 = vmatpush1.bf16.msra.mxu0 %v1381
        %1695 = vmatprep.subr.bf16.mxu0 0
        %1696 = vmatpush1.bf16.msra.mxu0 %v1382
        %1697 = vmatprep.subr.bf16.mxu0 0
        %1698 = vmatpush1.bf16.msra.mxu0 %v1383
        %1699 = vmatprep.subr.bf16.mxu0 0
        %1700 = vmatpush1.bf16.msra.mxu0 %v1384
        %1701 = vmatprep.subr.bf16.mxu0 0
        %1702 = vmatpush1.bf16.msra.mxu0 %v1385
        %1703 = vmatprep.subr.bf16.mxu0 0
        %1704 = vmatpush1.bf16.msra.mxu0 %v1386
        %1705 = vmatprep.subr.bf16.mxu0 0
        %1706 = vmatpush1.bf16.msra.mxu0 %v1387
        %1707 = vmatprep.mubr.bf16.mxu0 %v697
        %1708 = vmatmul.mubr.bf16.gmra.mrb[0].mxu0 %v696
        %v1709 = vpop.f32.mrb[0].mxu0
        %v1710 = vadd.f32 %v1669, %v1709
        %v1711 = vpop.f32.mrb[0].mxu0
        %v1712 = vpop.f32.mrb[0].mxu0
        %v1713 = vadd.f32 %v1672, %v1712
        %v1714 = vpop.f32.mrb[0].mxu0
        %1715 = vdwg.mxu0
        %1716 = vmatprep.subr.bf16.mxu0 0
        %1717 = vmatpush1.bf16.msra.mxu0 %v1388
        %1718 = vmatprep.subr.bf16.mxu0 0
        %1719 = vmatpush1.bf16.msra.mxu0 %v1389
        %1720 = vmatprep.subr.bf16.mxu0 0
        %1721 = vmatpush1.bf16.msra.mxu0 %v1390
        %1722 = vmatprep.subr.bf16.mxu0 0
        %1723 = vmatpush1.bf16.msra.mxu0 %v1391
        %1724 = vmatprep.subr.bf16.mxu0 0
        %1725 = vmatpush1.bf16.msra.mxu0 %v1392
        %1726 = vmatprep.subr.bf16.mxu0 0
        %1727 = vmatpush1.bf16.msra.mxu0 %v1393
        %1728 = vmatprep.subr.bf16.mxu0 0
        %1729 = vmatpush1.bf16.msra.mxu0 %v1394
        %1730 = vmatprep.subr.bf16.mxu0 0
        %1731 = vmatpush1.bf16.msra.mxu0 %v1395
        %1732 = vmatprep.subr.bf16.mxu0 0
        %1733 = vmatpush1.bf16.msra.mxu0 %v1396
        %1734 = vmatprep.subr.bf16.mxu0 0
        %1735 = vmatpush1.bf16.msra.mxu0 %v1397
        %1736 = vmatprep.subr.bf16.mxu0 0
        %1737 = vmatpush1.bf16.msra.mxu0 %v1398
        %1738 = vmatprep.subr.bf16.mxu0 0
        %1739 = vmatpush1.bf16.msra.mxu0 %v1399
        %1740 = vmatprep.subr.bf16.mxu0 0
        %1741 = vmatpush1.bf16.msra.mxu0 %v1400
        %1742 = vmatprep.subr.bf16.mxu0 0
        %1743 = vmatpush1.bf16.msra.mxu0 %v1401
        %1744 = vmatprep.subr.bf16.mxu0 0
        %1745 = vmatpush1.bf16.msra.mxu0 %v1402
        %1746 = vmatprep.subr.bf16.mxu0 0
        %1747 = vmatpush1.bf16.msra.mxu0 %v1403
        %1748 = vmatprep.mubr.bf16.mxu0 %v699
        %1749 = vmatmul.mubr.bf16.gmra.mrb[0].mxu0 %v698
        %v1750 = vpop.f32.mrb[0].mxu0
        %v1751 = vadd.f32 %v1710, %v1750
        %v1752 = vpop.f32.mrb[0].mxu0
        %v1753 = vpop.f32.mrb[0].mxu0
        %v1754 = vadd.f32 %v1713, %v1753
        %v1755 = vpop.f32.mrb[0].mxu0
        %1756 = vdwg.mxu0
        %1757 = vmatprep.subr.bf16.mxu0 0
        %1758 = vmatpush1.bf16.msra.mxu0 %v1404
        %1759 = vmatprep.subr.bf16.mxu0 0
        %1760 = vmatpush1.bf16.msra.mxu0 %v1405
        %1761 = vmatprep.subr.bf16.mxu0 0
        %1762 = vmatpush1.bf16.msra.mxu0 %v1406
        %1763 = vmatprep.subr.bf16.mxu0 0
        %1764 = vmatpush1.bf16.msra.mxu0 %v1407
        %1765 = vmatprep.subr.bf16.mxu0 0
        %1766 = vmatpush1.bf16.msra.mxu0 0
        %1767 = vmatprep.subr.bf16.mxu0 0
        %1768 = vmatpush1.bf16.msra.mxu0 0
        %1769 = vmatprep.subr.bf16.mxu0 0
        %1770 = vmatpush1.bf16.msra.mxu0 0
        %1771 = vmatprep.subr.bf16.mxu0 0
        %1772 = vmatpush1.bf16.msra.mxu0 0
        %1773 = vmatprep.subr.bf16.mxu0 0
        %1774 = vmatpush1.bf16.msra.mxu0 0
        %1775 = vmatprep.subr.bf16.mxu0 0
        %1776 = vmatpush1.bf16.msra.mxu0 0
        %1777 = vmatprep.subr.bf16.mxu0 0
        %1778 = vmatpush1.bf16.msra.mxu0 0
        %1779 = vmatprep.subr.bf16.mxu0 0
        %1780 = vmatpush1.bf16.msra.mxu0 0
        %1781 = vmatprep.subr.bf16.mxu0 0
        %1782 = vmatpush1.bf16.msra.mxu0 0
        %1783 = vmatprep.subr.bf16.mxu0 0
        %1784 = vmatpush1.bf16.msra.mxu0 0
        %1785 = vmatprep.subr.bf16.mxu0 0
        %1786 = vmatpush1.bf16.msra.mxu0 0
        %1787 = vmatprep.subr.bf16.mxu0 0
        %1788 = vmatpush1.bf16.msra.mxu0 0
        %1789 = vmatprep.mubr.bf16.mxu0 0
        %1790 = vmatmul.mubr.bf16.gmra.mrb[0].mxu0 %v1509
        %v1791 = vpop.f32.mrb[0].mxu0
        %v1792 = vadd.f32 %v1751, %v1791
        %v1793 = vpop.f32.mrb[0].mxu0
        %v1794 = vpop.f32.mrb[0].mxu0
        %v1795 = vadd.f32 %v1754, %v1794
        %v1796 = vpop.f32.mrb[0].mxu0
        %1797 = vdwg.mxu0
        %vm1798 = vcmask 261120
        %1799 = vst.msk [vmem:[#allocation4] sm:$0xff] %vm1798, %v1792
        %1800 = vst.msk [vmem:[#allocation4 + $0x8] sm:$0xff] %vm1798, %v1795
        %v1801 = vld [vmem:[#allocation4] sm:$0x1]
        %v1802 = vld [vmem:[#allocation4 + $0x1] sm:$0x1]
        %v1803 = vmax.f32 %v1801, %v1802
        %v1804 = vld [vmem:[#allocation4 + $0x8] sm:$0x1]
        %v1805 = vld [vmem:[#allocation4 + $0x9] sm:$0x1]
        %v1806 = vmax.f32 %v1804, %v1805
        %v1807 = vmax.f32 %v1803, %v1806
        %vm1808 = vcmask 253952
        %1809 = vst.msk [vmem:[%s217] sm:$0x1] %vm1808, %v1807
        %s1810 = sand.u32 %s137, 1
        %s1811 = scalar_lea.sflag [#allocation6], %s1810
        %s1812 = sand.u32 %s137, 1
        %s1813 = scalar_lea.vmem [#allocation5], %s1812
        // Predicated region
        $region41: #{spaconv_forward.1} parent=39 // pred_check
          %p1814 = pneg %p147
        $region42: #{spaconv_forward.1} parent=39 // pred_check_branch
          %1816 = sbr.rel (%p1814) target = $region44
        $region43: #{spaconv_forward.1} parent=39 // pred_region
          %s1818 = ssub.s32 16, 16
          %1819 = vsyncadd %s1811, %s1818
          %s1820 = smul.addr %s19, 16
          %s1821 = scalar_lea.hbm %s5, %s1820
          %s1823 = sshll.u32 %s1813, 4
          %s1824 = int_to_ptr.vmem [resolvable:$true] %s1823
          %1826 = dma.vmem_to_hbm [thread:$0]  %s1824, 16, %s1821, %s1811
        $region44: #{spaconv_forward.1} parent=39 // pred_fallthru
          _
      $region40: #{spaconv_forward.1} parent=5 // pred_fallthru
        _
      %p1827 = scmp.le.s32.totalorder 2, %s14
      // Predicated region
      $region45: #{spaconv_forward.1} parent=5 // pred_check
        %p1828 = pneg %p1827
      $region46: #{spaconv_forward.1} parent=5 // pred_check_branch
        %1830 = sbr.rel (%p1828) target = $region48
      $region47: #{spaconv_forward.1} parent=5 // pred_region
        %s1831 = ssub.s32 %s14, 2
        // Predicated region
        $region49: #{spaconv_forward.1} parent=47 // pred_check
          %p1832 = pneg %p153
        $region50: #{spaconv_forward.1} parent=47 // pred_check_branch
          %1834 = sbr.rel (%p1832) target = $region52
        $region51: #{spaconv_forward.1} parent=47 // pred_region
          %s1835 = sand.u32 %s138, 1
          %s1836 = scalar_lea.sflag [#allocation6], %s1835
          %s1837 = sand.u32 %s138, 1
          %s1838 = scalar_lea.vmem [#allocation5], %s1837
          %1839 = dma.done %s1836, 16
        $region52: #{spaconv_forward.1} parent=47 // pred_fallthru
          _
      $region48: #{spaconv_forward.1} parent=5 // pred_fallthru
        _
    $region6: #{spaconv_forward.1} parent=1 // loop_footer
      %s18 = sadd.s32 1, %s14
    $region7: #{spaconv_forward.1} parent=1 // loop_footer_branch
      %13 = sbr.rel target = $region3
    $region8: #{spaconv_forward.1} parent=1 // loop_exit
      _
    %1840 = vsyncpa [#allocation6], 1
    %s1841 = scalar_lea.sflag [#allocation6], 1
    %1842 = vsyncpa %s1841, 1

</llo_original>
